<compile_context>
chip_gen: v7x
topology: tpu7x:2x2x1
jax: 0.10.0
libtpu: 0.0.40
codegen_flags: <defaults>
</compile_context>

<pallas_src>
import functools

import jax
import jax.numpy as jnp
from jax.experimental import pallas as pl
from jax.experimental.pallas import tpu as pltpu

VMEM_LIMIT = 48 * 1024 * 1024          # leave headroom on 64 MiB (v7x) parts
_FUSED_BN_MAX_BYTES = 4 * 1024 * 1024  # per-slab threshold for single-block BN


def _round_up(x, m):
    return (x + m - 1) // m * m


def _row_tile(M, C, target_bytes=2 * 1024 * 1024):
    """Row tile for (rows, C) f32 slabs: ~2 MiB per block, multiple of 8."""
    t = target_bytes // (C * 4)
    t = max(8, min(4096, (t // 8) * 8))
    return min(t, _round_up(M, 8))


# --------------------------------------------------------------------------
# Tiled MXU matmul (bf16 inputs, f32 accumulation directly in o_ref)
# --------------------------------------------------------------------------
def _matmul_kernel(a_ref, b_ref, o_ref):
    @pl.when(pl.program_id(2) == 0)
    def _():
        o_ref[...] = jnp.zeros_like(o_ref)

    o_ref[...] += jnp.dot(a_ref[...], b_ref[...],
                          preferred_element_type=jnp.float32)


def _matmul_bias_kernel(a_ref, b_ref, bias_ref, o_ref):
    @pl.when(pl.program_id(2) == 0)
    def _():
        o_ref[...] = jnp.broadcast_to(bias_ref[...], o_ref.shape)

    o_ref[...] += jnp.dot(a_ref[...], b_ref[...],
                          preferred_element_type=jnp.float32)


def _matmul_impl(a, b, bias=None):
    M, K = a.shape
    K2, N = b.shape
    assert K == K2
    tm = min(512, _round_up(M, 8))
    tn = min(256, _round_up(N, 128))
    tk = min(2048, _round_up(K, 128))
    Mp, Np, Kp = _round_up(M, tm), _round_up(N, tn), _round_up(K, tk)
    a_p = jnp.pad(a, ((0, Mp - M), (0, Kp - K))).astype(jnp.bfloat16)
    b_p = jnp.pad(b, ((0, Kp - K), (0, Np - N))).astype(jnp.bfloat16)

    in_specs = [pl.BlockSpec((tm, tk), lambda i, j, k: (i, k)),
                pl.BlockSpec((tk, tn), lambda i, j, k: (k, j))]
    args = [a_p, b_p]
    if bias is None:
        kernel = _matmul_kernel
    else:
        kernel = _matmul_bias_kernel
        bias_p = jnp.pad(bias.reshape(1, -1).astype(jnp.float32),
                         ((0, 0), (0, Np - N)))
        in_specs.append(pl.BlockSpec((1, tn), lambda i, j, k: (0, j)))
        args.append(bias_p)

    out = pl.pallas_call(
        kernel,
        out_shape=jax.ShapeDtypeStruct((Mp, Np), jnp.float32),
        grid=(Mp // tm, Np // tn, Kp // tk),
        in_specs=in_specs,
        out_specs=pl.BlockSpec((tm, tn), lambda i, j, k: (i, j)),
        compiler_params=pltpu.CompilerParams(
            dimension_semantics=("parallel", "parallel", "arbitrary"),
            vmem_limit_bytes=VMEM_LIMIT),
    )(*args)
    return out[:M, :N]


matmul = jax.jit(lambda a, b: _matmul_impl(a, b))
linear_fwd = jax.jit(lambda x, w, b: _matmul_impl(x, w, b))


# --------------------------------------------------------------------------
# 3x3 / stride-1 / pad-1 convolution, im2col-free
# --------------------------------------------------------------------------
def _conv3x3_kernel(x_ref, w_ref, o_ref, *, S, M):
    first = True
    for dy in range(3):
        for dx in range(3):
            off = dy * S + dx
            a = x_ref[0, off:off + M, :].astype(jnp.bfloat16)
            p = jnp.dot(a, w_ref[dy, dx], preferred_element_type=jnp.float32)
            if first:
                o_ref[0] = p
                first = False
            else:
                o_ref[0] += p


@jax.jit
def conv3x3_s1_p1(x, w):
    # x: (N,H,W,Cin) f32, w: (3,3,Cin,Cout) f32
    N, H, W, Cin = x.shape
    Cout = w.shape[-1]
    S = _round_up(W + 2, 8)       # padded width == output row stride
    R = (H + 3) * S               # extra bottom rows so every tap read is in-bounds
    M = H * S                     # output rows per sample (cols >= W are discarded)
    xp = jnp.pad(x, ((0, 0), (1, 2), (1, S - W - 1), (0, 0)))
    xf = xp.reshape(N, R, Cin)
    wb = w.astype(jnp.bfloat16)
    tn = Cout if Cout < 128 else min(256, Cout)
    out = pl.pallas_call(
        functools.partial(_conv3x3_kernel, S=S, M=M),
        out_shape=jax.ShapeDtypeStruct((N, M, Cout), jnp.float32),
        grid=(N, Cout // tn),
        in_specs=[pl.BlockSpec((1, R, Cin), lambda n, j: (n, 0, 0)),
                  pl.BlockSpec((3, 3, Cin, tn), lambda n, j: (0, 0, 0, j))],
        out_specs=pl.BlockSpec((1, M, tn), lambda n, j: (n, 0, j)),
        compiler_params=pltpu.CompilerParams(
            dimension_semantics=("parallel", "parallel"),
            vmem_limit_bytes=VMEM_LIMIT),
    )(xf, wb)
    return out.reshape(N, H, S, Cout)[:, :, :W, :]


def conv1x1(x, w, stride=1):
    # x: NHWC, w: (Cin, Cout)
    if stride > 1:
        x = x[:, ::stride, ::stride, :]
    N, H, W, C = x.shape
    y = matmul(x.reshape(N * H * W, C), w)
    return y.reshape(N, H, W, -1)


@jax.jit
def conv7x7_s2_p3(x, w):
    # TODO(synk): the stride-2 7x7 stem stages its patches with XLA im2col
    # (bf16); it is a single layer with Cin=4 so the staged data is tiny and
    # the matmul itself still runs on the Pallas MXU kernel.
    kh, kw, Cin, Cout = w.shape
    N, H, W, _ = x.shape
    stride, pad = 2, 3
    xp = jnp.pad(x, ((0, 0), (pad, pad), (pad, pad), (0, 0))).astype(jnp.bfloat16)
    Ho = (H + 2 * pad - kh) // stride + 1
    Wo = (W + 2 * pad - kw) // stride + 1
    cols = [xp[:, dy:dy + stride * (Ho - 1) + 1:stride,
               dx:dx + stride * (Wo - 1) + 1:stride, :]
            for dy in range(kh) for dx in range(kw)]
    patches = jnp.concatenate(cols, axis=-1)
    y = _matmul_impl(patches.reshape(N * Ho * Wo, kh * kw * Cin),
                     w.reshape(kh * kw * Cin, Cout))
    return y.reshape(N, Ho, Wo, Cout)


# --------------------------------------------------------------------------
# BatchNorm (training-mode batch stats).
#  * Small slabs (always true at the test shapes): ONE fused Pallas kernel
#    computes per-channel sum/sumsq, mean/var, affine, optional residual add
#    and ReLU in a single pass over a single resident block.
#  * Large slabs: per-channel sums via XLA, then a row-tiled Pallas
#    normalize(+residual)(+ReLU) pass.
# --------------------------------------------------------------------------
def _bn_fused_kernel(x_ref, g_ref, b_ref, o_ref, *, relu, eps):
    x = x_ref[...]
    m = x.shape[0]
    mean = jnp.sum(x, axis=0, keepdims=True) * (1.0 / m)
    var = jnp.maximum(jnp.sum(x * x, axis=0, keepdims=True) * (1.0 / m)
                      - mean * mean, 0.0)
    scale = g_ref[...] * jax.lax.rsqrt(var + eps)
    shift = b_ref[...] - mean * scale
    y = x * scale + shift
    if relu:
        y = jnp.maximum(y, 0.0)
    o_ref[...] = y


def _bn_fused_res_kernel(x_ref, r_ref, g_ref, b_ref, o_ref, *, relu, eps):
    x = x_ref[...]
    m = x.shape[0]
    mean = jnp.sum(x, axis=0, keepdims=True) * (1.0 / m)
    var = jnp.maximum(jnp.sum(x * x, axis=0, keepdims=True) * (1.0 / m)
                      - mean * mean, 0.0)
    scale = g_ref[...] * jax.lax.rsqrt(var + eps)
    shift = b_ref[...] - mean * scale
    y = x * scale + shift + r_ref[...]
    if relu:
        y = jnp.maximum(y, 0.0)
    o_ref[...] = y


def _bn_norm_kernel(x_ref, s_ref, b_ref, o_ref, *, relu):
    y = x_ref[...] * s_ref[...] + b_ref[...]
    if relu:
        y = jnp.maximum(y, 0.0)
    o_ref[...] = y


def _bn_norm_res_kernel(x_ref, r_ref, s_ref, b_ref, o_ref, *, relu):
    y = x_ref[...] * s_ref[...] + b_ref[...] + r_ref[...]
    if relu:
        y = jnp.maximum(y, 0.0)
    o_ref[...] = y


def _bn_apply(x2d, gamma, beta, relu, residual, eps=1e-5):
    M, C = x2d.shape

    if M * C * 4 <= _FUSED_BN_MAX_BYTES:
        if residual is None:
            kernel = functools.partial(_bn_fused_kernel, relu=relu, eps=eps)
            in_specs = [pl.BlockSpec((M, C), lambda i: (0, 0)),
                        pl.BlockSpec((1, C), lambda i: (0, 0)),
                        pl.BlockSpec((1, C), lambda i: (0, 0))]
            args = (x2d, gamma, beta)
        else:
            kernel = functools.partial(_bn_fused_res_kernel, relu=relu, eps=eps)
            in_specs = [pl.BlockSpec((M, C), lambda i: (0, 0)),
                        pl.BlockSpec((M, C), lambda i: (0, 0)),
                        pl.BlockSpec((1, C), lambda i: (0, 0)),
                        pl.BlockSpec((1, C), lambda i: (0, 0))]
            args = (x2d, residual, gamma, beta)
        return pl.pallas_call(
            kernel,
            out_shape=jax.ShapeDtypeStruct((M, C), jnp.float32),
            grid=(1,),
            in_specs=in_specs,
            out_specs=pl.BlockSpec((M, C), lambda i: (0, 0)),
            compiler_params=pltpu.CompilerParams(
                dimension_semantics=("arbitrary",),
                vmem_limit_bytes=VMEM_LIMIT),
        )(*args)

    # Large-slab fallback: XLA channel sums + tiled Pallas normalize pass.
    mean = jnp.mean(x2d, axis=0, keepdims=True)
    var = jnp.maximum(jnp.mean(x2d * x2d, axis=0, keepdims=True) - mean * mean,
                      0.0)
    scale = gamma * jax.lax.rsqrt(var + eps)
    shift = beta - mean * scale

    t = _row_tile(M, C)
    Mp = _round_up(M, t)
    xp = jnp.pad(x2d, ((0, Mp - M), (0, 0)))
    if residual is None:
        kernel = functools.partial(_bn_norm_kernel, relu=relu)
        in_specs = [pl.BlockSpec((t, C), lambda i: (i, 0)),
                    pl.BlockSpec((1, C), lambda i: (0, 0)),
                    pl.BlockSpec((1, C), lambda i: (0, 0))]
        args = (xp, scale, shift)
    else:
        rp = jnp.pad(residual, ((0, Mp - M), (0, 0)))
        kernel = functools.partial(_bn_norm_res_kernel, relu=relu)
        in_specs = [pl.BlockSpec((t, C), lambda i: (i, 0)),
                    pl.BlockSpec((t, C), lambda i: (i, 0)),
                    pl.BlockSpec((1, C), lambda i: (0, 0)),
                    pl.BlockSpec((1, C), lambda i: (0, 0))]
        args = (xp, rp, scale, shift)

    out = pl.pallas_call(
        kernel,
        out_shape=jax.ShapeDtypeStruct((Mp, C), jnp.float32),
        grid=(Mp // t,),
        in_specs=in_specs,
        out_specs=pl.BlockSpec((t, C), lambda i: (i, 0)),
        compiler_params=pltpu.CompilerParams(
            dimension_semantics=("parallel",),
            vmem_limit_bytes=VMEM_LIMIT),
    )(*args)
    return out[:M]


@functools.partial(jax.jit, static_argnames=("relu",))
def _bn_fwd(x2d, gamma, beta, relu):
    return _bn_apply(x2d, gamma, beta, relu, None)


@functools.partial(jax.jit, static_argnames=("relu",))
def _bn_res_fwd(x2d, res2d, gamma, beta, relu):
    return _bn_apply(x2d, gamma, beta, relu, res2d)


def batchnorm(x, bn, relu, residual=None):
    N, H, W, C = x.shape
    x2 = x.reshape(-1, C)
    if residual is None:
        y = _bn_fwd(x2, bn["gamma"], bn["beta"], relu)
    else:
        y = _bn_res_fwd(x2, residual.reshape(-1, C),
                        bn["gamma"], bn["beta"], relu)
    return y.reshape(N, H, W, C)


# --------------------------------------------------------------------------
# MaxPool 3x3 stride 2 pad 1 (even/odd split, per-sample grid)
# --------------------------------------------------------------------------
def _maxpool_kernel(ee_ref, eo_ref, oe_ref, oo_ref, o_ref):
    Ho, Wo = o_ref.shape[1], o_ref.shape[2]
    m = ee_ref[0, 0:Ho, 0:Wo, :]
    m = jnp.maximum(m, ee_ref[0, 0:Ho, 1:Wo + 1, :])
    m = jnp.maximum(m, ee_ref[0, 1:Ho + 1, 0:Wo, :])
    m = jnp.maximum(m, ee_ref[0, 1:Ho + 1, 1:Wo + 1, :])
    m = jnp.maximum(m, eo_ref[0, 0:Ho, :, :])
    m = jnp.maximum(m, eo_ref[0, 1:Ho + 1, :, :])
    m = jnp.maximum(m, oe_ref[0, :, 0:Wo, :])
    m = jnp.maximum(m, oe_ref[0, :, 1:Wo + 1, :])
    m = jnp.maximum(m, oo_ref[0])
    o_ref[0] = m


@jax.jit
def maxpool3x3_s2_p1(x):
    # x: NHWC f32
    N, H, W, C = x.shape
    Ho = (H + 2 - 3) // 2 + 1
    Wo = (W + 2 - 3) // 2 + 1
    xp = jnp.pad(x, ((0, 0), (1, 1), (1, 1), (0, 0)),
                 constant_values=-jnp.inf)
    ee = xp[:, 0:2 * Ho + 1:2, 0:2 * Wo + 1:2, :]   # (N, Ho+1, Wo+1, C)
    eo = xp[:, 0:2 * Ho + 1:2, 1:2 * Wo:2, :]       # (N, Ho+1, Wo,   C)
    oe = xp[:, 1:2 * Ho:2, 0:2 * Wo + 1:2, :]       # (N, Ho,   Wo+1, C)
    oo = xp[:, 1:2 * Ho:2, 1:2 * Wo:2, :]           # (N, Ho,   Wo,   C)
    return pl.pallas_call(
        _maxpool_kernel,
        out_shape=jax.ShapeDtypeStruct((N, Ho, Wo, C), jnp.float32),
        grid=(N,),
        in_specs=[pl.BlockSpec((1, Ho + 1, Wo + 1, C), lambda n: (n, 0, 0, 0)),
                  pl.BlockSpec((1, Ho + 1, Wo, C), lambda n: (n, 0, 0, 0)),
                  pl.BlockSpec((1, Ho, Wo + 1, C), lambda n: (n, 0, 0, 0)),
                  pl.BlockSpec((1, Ho, Wo, C), lambda n: (n, 0, 0, 0))],
        out_specs=pl.BlockSpec((1, Ho, Wo, C), lambda n: (n, 0, 0, 0)),
        compiler_params=pltpu.CompilerParams(
            dimension_semantics=("parallel",),
            vmem_limit_bytes=VMEM_LIMIT),
    )(ee, eo, oe, oo)


# --------------------------------------------------------------------------
# Softmax (row-tiled)
# --------------------------------------------------------------------------
def _softmax_kernel(x_ref, o_ref):
    x = x_ref[...]
    m = jnp.max(x, axis=-1, keepdims=True)
    e = jnp.exp(x - m)
    o_ref[...] = e / jnp.sum(e, axis=-1, keepdims=True)


@jax.jit
def softmax(x):
    B, K = x.shape
    Kp = _round_up(K, 128)
    Bp = _round_up(B, 8)
    xp = jnp.pad(x, ((0, 0), (0, Kp - K)), constant_values=-1e30)
    xp = jnp.pad(xp, ((0, Bp - B), (0, 0)))
    t = min(256, Bp)
    Bp2 = _round_up(Bp, t)
    xp = jnp.pad(xp, ((0, Bp2 - Bp), (0, 0)))
    out = pl.pallas_call(
        _softmax_kernel,
        out_shape=jax.ShapeDtypeStruct((Bp2, Kp), jnp.float32),
        grid=(Bp2 // t,),
        in_specs=[pl.BlockSpec((t, Kp), lambda i: (i, 0))],
        out_specs=pl.BlockSpec((t, Kp), lambda i: (i, 0)),
        compiler_params=pltpu.CompilerParams(
            dimension_semantics=("parallel",),
            vmem_limit_bytes=VMEM_LIMIT),
    )(xp)
    return out[:B, :K]


# --------------------------------------------------------------------------
# Parameter construction (deterministic, synthetic)
# --------------------------------------------------------------------------
class KeyGen:
    def __init__(self, seed):
        self.key = jax.random.PRNGKey(seed)

    def __call__(self):
        self.key, k = jax.random.split(self.key)
        return k


def conv_w(kg, kh, kw, cin, cout):
    fan_in = kh * kw * cin
    return jax.random.normal(kg(), (kh, kw, cin, cout),
                             jnp.float32) * (2.0 / fan_in) ** 0.5


def bn_p(c):
    return {"gamma": jnp.ones((1, c), jnp.float32),
            "beta": jnp.zeros((1, c), jnp.float32)}


def linear_p(kg, din, dout):
    w = jax.random.normal(kg(), (din, dout), jnp.float32) * (1.0 / din) ** 0.5
    b = jax.random.normal(kg(), (dout,), jnp.float32) * 0.01
    return {"w": w, "b": b}


def make_identity_block(kg, in_c, f, filters):
    F1, F2, F3 = filters
    return {"c1": conv_w(kg, 1, 1, in_c, F1), "bn1": bn_p(F1),
            "c2": conv_w(kg, f, f, F1, F2), "bn2": bn_p(F2),
            "c3": conv_w(kg, 1, 1, F2, F3), "bn3": bn_p(F3)}


def identity_block_fwd(p, x):
    y = conv1x1(x, p["c1"][0, 0])
    y = batchnorm(y, p["bn1"], relu=True)
    y = conv3x3_s1_p1(y, p["c2"])
    y = batchnorm(y, p["bn2"], relu=True)
    y = conv1x1(y, p["c3"][0, 0])
    # BN3 + residual add + ReLU fused in one Pallas pass
    return batchnorm(y, p["bn3"], relu=True, residual=x)


def make_conv_block(kg, in_c, f, filters):
    F1, F2, F3 = filters
    return {"c1": conv_w(kg, 1, 1, in_c, F1), "bn1": bn_p(F1),
            "c2": conv_w(kg, f, f, F1, F2), "bn2": bn_p(F2),
            "c3": conv_w(kg, 1, 1, F2, F3), "bn3": bn_p(F3),
            "sc": conv_w(kg, 1, 1, in_c, F3), "bnsc": bn_p(F3)}


def conv_block_fwd(p, x, s):
    sc = conv1x1(x, p["sc"][0, 0], stride=s)
    sc = batchnorm(sc, p["bnsc"], relu=False)
    y = conv1x1(x, p["c1"][0, 0], stride=s)
    y = batchnorm(y, p["bn1"], relu=True)
    y = conv3x3_s1_p1(y, p["c2"])
    y = batchnorm(y, p["bn2"], relu=True)
    y = conv1x1(y, p["c3"][0, 0])
    return batchnorm(y, p["bn3"], relu=True, residual=sc)


def make_global_encoder(kg, inchannel, outchannel):
    p = {}
    p["conv1"] = conv_w(kg, 7, 7, inchannel, 64)
    p["bn1"] = bn_p(64)
    p["s2"] = [make_conv_block(kg, 64, 3, [64, 64, 256]),
               make_identity_block(kg, 256, 3, [64, 64, 256]),
               make_identity_block(kg, 256, 3, [64, 64, 256])]
    p["s3"] = ([make_conv_block(kg, 256, 3, [128, 128, 512])] +
               [make_identity_block(kg, 512, 3, [128, 128, 512])
                for _ in range(3)])
    p["s4"] = ([make_conv_block(kg, 512, 3, [256, 256, 1024])] +
               [make_identity_block(kg, 1024, 3, [256, 256, 1024])
                for _ in range(5)])
    p["rconv"] = conv_w(kg, 1, 1, 1024, outchannel)
    p["rbn"] = bn_p(outchannel)
    return p


def global_encoder_fwd(p, x):
    y = conv7x7_s2_p3(x, p["conv1"])
    y = batchnorm(y, p["bn1"], relu=True)
    y = maxpool3x3_s2_p1(y)
    y = conv_block_fwd(p["s2"][0], y, 1)
    for b in p["s2"][1:]:
        y = identity_block_fwd(b, y)
    y = conv_block_fwd(p["s3"][0], y, 2)
    for b in p["s3"][1:]:
        y = identity_block_fwd(b, y)
    y = conv_block_fwd(p["s4"][0], y, 2)
    for b in p["s4"][1:]:
        y = identity_block_fwd(b, y)
    y = conv1x1(y, p["rconv"][0, 0])
    y = batchnorm(y, p["rbn"], relu=True)
    return y


def make_endlayer(kg, inchannel, outchannel):
    return {"ib1": make_identity_block(kg, inchannel, 3,
                                       [inchannel, 1024, inchannel]),
            "c1": conv_w(kg, 1, 1, inchannel, 256), "bn1": bn_p(256),
            "ib2": make_identity_block(kg, 256, 3, [256, 512, 256]),
            "c2": conv_w(kg, 1, 1, 256, outchannel), "bn2": bn_p(outchannel),
            "ib3": make_identity_block(kg, outchannel, 3,
                                       [outchannel, 64, outchannel])}


def endlayer_fwd(p, x):
    y = identity_block_fwd(p["ib1"], x)
    y = conv1x1(y, p["c1"][0, 0])
    y = batchnorm(y, p["bn1"], relu=True)
    y = identity_block_fwd(p["ib2"], y)
    y = conv1x1(y, p["c2"][0, 0])
    y = batchnorm(y, p["bn2"], relu=True)
    return identity_block_fwd(p["ib3"], y)


def make_rphe(kg, inchannel, outchannel, kind, feat_hw):
    # TODO(synk): torch hardcodes 128*14*14 FC in-features (i.e. 224x224
    # inputs); here the in-features are derived from the actual encoder
    # output spatial size so the small test shapes stay self-consistent.
    fc_in = 128 * feat_hw * feat_hw
    return {"ge": make_global_encoder(kg, inchannel, outchannel),
            "ge1": make_global_encoder(kg, inchannel, outchannel),
            "he_enc": make_endlayer(kg, 512, 128),
            "ed_enc": make_endlayer(kg, 512, 128),
            "he_fc1": linear_p(kg, fc_in, 256),
            "he_fc2": linear_p(kg, 256, kind),
            "ed_fc1": linear_p(kg, fc_in, 256),
            "ed_fc2": linear_p(kg, 256, kind)}


def rphe_forward(params, x_base_nchw, x_add_nchw):
    # NCHW (PyTorch) -> NHWC for all internal compute
    xb = jnp.transpose(x_base_nchw, (0, 2, 3, 1))
    xa = jnp.transpose(x_add_nchw, (0, 2, 3, 1))
    y_base = global_encoder_fwd(params["ge"], xb)
    y_add = global_encoder_fwd(params["ge1"], xa)
    # out_global / out_base are computed but unused in the torch forward -> skipped.
    out = jnp.concatenate([y_base, y_add], axis=-1)   # torch cat dim=1 (channels)
    he = endlayer_fwd(params["he_enc"], out)
    ed = endlayer_fwd(params["ed_enc"], out)
    B = he.shape[0]
    # flatten in NCHW order to match torch's .view(B, -1)
    he_flat = jnp.transpose(he, (0, 3, 1, 2)).reshape(B, -1)
    ed_flat = jnp.transpose(ed, (0, 3, 1, 2)).reshape(B, -1)
    he_logits = linear_fwd(he_flat, params["he_fc1"]["w"], params["he_fc1"]["b"])
    he_logits = linear_fwd(he_logits, params["he_fc2"]["w"], params["he_fc2"]["b"])
    ed_logits = linear_fwd(ed_flat, params["ed_fc1"]["w"], params["ed_fc1"]["b"])
    ed_logits = linear_fwd(ed_logits, params["ed_fc2"]["w"], params["ed_fc2"]["b"])
    return softmax(he_logits), softmax(ed_logits)


# --------------------------------------------------------------------------
if __name__ == "__main__":
    # Small test shapes: the stem (/2) + maxpool (/2) + two stride-2 stages
    # (/4) downsample by 16x, so 64x64 inputs give 4x4 feature maps.
    # outchannel must be 256 since the Endlayers expect 512 = 2*256 channels.
    B, Cin, H, W = 2, 4, 64, 64
    kind = 3
    outchannel = 256
    feat_hw = H // 16

    params = make_rphe(KeyGen(1), Cin, outchannel, kind, feat_hw)

    k1, k2 = jax.random.split(jax.random.PRNGKey(0))
    x_base = jax.random.normal(k1, (B, Cin, H, W), jnp.float32)
    x_add = jax.random.normal(k2, (B, Cin, H, W), jnp.float32)

    he_out, edema_out = rphe_forward(params, x_base, x_add)
    jax.block_until_ready((he_out, edema_out))

    assert he_out.shape == (B, kind) and edema_out.shape == (B, kind)
    assert bool(jnp.all(jnp.isfinite(he_out))) and bool(jnp.all(jnp.isfinite(edema_out)))
    print("KERNEL_OK")
</pallas_src>

<mosaic_0001>
module attributes {stable_mosaic.version = 11 : i64} {
  func.func @_matmul_kernel(%arg0: i32, %arg1: i32, %arg2: i32, %arg3: memref<512x256xbf16, #tpu.memory_space<vmem>>, %arg4: memref<256x128xbf16, #tpu.memory_space<vmem>>, %arg5: memref<512x128xf32, #tpu.memory_space<vmem>>) attributes {dimension_semantics = [#tpu.dimension_semantics<parallel>, #tpu.dimension_semantics<parallel>, #tpu.dimension_semantics<arbitrary>], iteration_bounds = array<i64: 4, 1, 1>, scalar_prefetch = 0 : i64, scratch_operands = 0 : i64, tpu.core_type = #tpu.core_type<tc>, window_params = [{transform_indices = @transform_0, window_bounds = array<i64: 512, 256>}, {transform_indices = @transform_1, window_bounds = array<i64: 256, 128>}, {transform_indices = @transform_2, window_bounds = array<i64: 512, 128>}]} {
    %c0_i32 = arith.constant 0 : i32
    %0 = arith.cmpi eq, %arg2, %c0_i32 : i32
    %1 = arith.extui %0 : i1 to i32
    %c0_i32_0 = arith.constant 0 : i32
    %2 = arith.cmpi ne, %1, %c0_i32_0 : i32
    scf.if %2 {
      %cst_8 = arith.constant 0.000000e+00 : f32
      %9 = vector.broadcast %cst_8 : f32 to vector<512x128xf32>
      %c0_9 = arith.constant 0 : index
      %c0_10 = arith.constant 0 : index
      %10 = vector.load %arg5[%c0_9, %c0_10] : memref<512x128xf32, #tpu.memory_space<vmem>>, vector<512x128xf32>
      tpu.vector_store %arg5[%c0_9, %c0_10], %9 {strides = array<i32>} : memref<512x128xf32, #tpu.memory_space<vmem>>, vector<512x128xf32>,
    } else {
    }
    %c0 = arith.constant 0 : index
    %c0_1 = arith.constant 0 : index
    %3 = vector.load %arg5[%c0, %c0_1] : memref<512x128xf32, #tpu.memory_space<vmem>>, vector<512x128xf32>
    %c0_2 = arith.constant 0 : index
    %c0_3 = arith.constant 0 : index
    %4 = vector.load %arg3[%c0_2, %c0_3] : memref<512x256xbf16, #tpu.memory_space<vmem>>, vector<512x256xbf16>
    %c0_4 = arith.constant 0 : index
    %c0_5 = arith.constant 0 : index
    %5 = vector.load %arg4[%c0_4, %c0_5] : memref<256x128xbf16, #tpu.memory_space<vmem>>, vector<256x128xbf16>
    %cst = arith.constant dense<0.000000e+00> : vector<512x128xf32>
    %6 = tpu.matmul %4, %5, %cst {dimension_numbers = #tpu.dot_dimension_numbers<[1], [0], [0], [1], [0, 0, 1, 1], [], []>} : vector<512x256xbf16>, vector<256x128xbf16>, vector<512x128xf32> -> vector<512x128xf32>
    %7 = arith.addf %3, %6 : vector<512x128xf32>
    %c0_6 = arith.constant 0 : index
    %c0_7 = arith.constant 0 : index
    %8 = vector.load %arg5[%c0_6, %c0_7] : memref<512x128xf32, #tpu.memory_space<vmem>>, vector<512x128xf32>
    tpu.vector_store %arg5[%c0_6, %c0_7], %7 {strides = array<i32>} : memref<512x128xf32, #tpu.memory_space<vmem>>, vector<512x128xf32>,
    return
  }
  func.func @transform_0(%arg0: i32, %arg1: i32, %arg2: i32) -> (i32, i32) {
    %c0_i32 = arith.constant 0 : i32
    return %arg0, %arg2 : i32, i32
  }
  func.func @transform_1(%arg0: i32, %arg1: i32, %arg2: i32) -> (i32, i32) {
    %c0_i32 = arith.constant 0 : i32
    return %arg2, %arg1 : i32, i32
  }
  func.func @transform_2(%arg0: i32, %arg1: i32, %arg2: i32) -> (i32, i32) {
    %c0_i32 = arith.constant 0 : i32
    return %arg0, %arg1 : i32, i32
  }
}

</mosaic_0001>

<llo_original>
// kernel: conv7x7_s2_p3.1
$region0: #{conv7x7_s2_p3.1}
  #allocation0 [shape = 'u32[]', space=smem, size = 0x4, offset = 0x4, fixed_abs, tag = 'smem constant byte address 0x4 - core index']
  #allocation1 [shape = 'u32[144,128]{1,0:T(1,128)}', space=vmem, size = 0x12000, scoped, tag = 'internal scratch']
  %s0 = inlined_call_operand.vmem [shape: bf16[2048,256], index: 0, kind: input, shape index: {}]
  %s1 = inlined_call_operand.vmem [shape: bf16[256,128], index: 1, kind: input, shape index: {}]
  %s2 = inlined_call_operand.hbm [shape: f32[2048,128], index: 2, kind: output, shape index: {}]
  %s3 = sld [smem:[#allocation0]]
  $region45: #{conv7x7_s2_p3.1} parent=0
    _
  %s5 = ssub.s32 1, %s3
  %s6 = scalar_select 0, %s5, %s3
  $region1: #{conv7x7_s2_p3.1} parent=0
    #allocation2 [shape = 'u8[524288]{0}', space=vmem, size = 0x80000, scoped, tag = 'output window, operand 0']
    #allocation3 [shape = 's32[2]{0}', space=sflag, size = 0x8, scoped, tag = 'scoped memory for conv7x7_s2_p3.1']
    %7 = vsyncpa [#allocation3], 0
    %s8 = scalar_lea.sflag [#allocation3], 1
    %9 = vsyncpa %s8, 0
    loop: start=0, step=1, limit=6
    $region2: #{conv7x7_s2_p3.1} parent=1 // loop_pre_header
      _
    $region3: #{conv7x7_s2_p3.1} parent=1 // loop_header
      %s11 = sphi 0, %s15
      %p12 = scmp.ge.s32.totalorder %s11, 6
      %s18 = sphi 0, %s37
      %s19 = sphi 0, %s33
      %s20 = sphi 0, %s29
      %s21 = sphi 0, %s18
      %s22 = sphi 0, %s19
      %s23 = sphi 0, %s20
      %s24 = sphi 0, %s21
      %s25 = sphi 0, %s22
      %s26 = sphi 0, %s23
      %s42 = sphi 0, %s44
      %s45 = sphi 0, %s42
      %s46 = sphi 0, %s45
      %s62 = sphi 0, %s46
      %s70 = sphi 0, %s72
      %s73 = sphi 0, %s70
      %s74 = sphi 0, %s73
      %s90 = sphi 0, %s74
      %s98 = sphi 0, %s100
      %s101 = sphi 0, %s98
      %s102 = sphi 0, %s101
      %s118 = sphi 0, %s102
    $region4: #{conv7x7_s2_p3.1} parent=1 // loop_header_branch
      %14 = sbr.rel (%p12) target = $region8
    $region5: #{conv7x7_s2_p3.1} parent=1 // loop_body
      %s16 = ssub.s32 %s11, 1
      %s17 = ssub.s32 %s11, 2
      %s27 = sadd.s32 1, %s20
      %p28 = scmp.ge.s32.totalorder %s27, 1
      %s29 = scalar_select %p28, 0, %s27
      %s30 = sadd.s32 1, %s19
      %s31 = scalar_select %p28, %s30, %s19
      %p32 = scmp.ge.s32.totalorder %s31, 1
      %s33 = scalar_select %p32, 0, %s31
      %s34 = sadd.s32 1, %s18
      %s35 = scalar_select %p32, %s34, %s18
      %p36 = scmp.ge.s32.totalorder %s35, 4
      %s37 = scalar_select %p36, 0, %s35
      %s38 = ssub.s32 %s18, %s37
      %s39 = ssub.s32 %s20, %s29
      %s40 = sor.u32 %s38, %s39
      %p41 = scmp.eq.s32.totalorder %s40, 0
      %s43 = sadd.s32 %s42, 1
      %s44 = scalar_select %p41, %s42, %s43
      %p47 = pneg %p41
      %p48 = scmp.eq.s32.totalorder %s11, 3
      %p49 = por %p47, %p48
      %p50 = scmp.ne.s32.totalorder %s42, %s45
      %p51 = scmp.eq.s32.totalorder %s11, 0
      %p52 = por %p50, %p51
      %p53 = scmp.ne.s32.totalorder %s42, %s45
      %p54 = scmp.eq.s32.totalorder %s16, 3
      %p55 = por %p53, %p54
      %p56 = scmp.ne.s32.totalorder %s45, %s46
      %p57 = scmp.eq.s32.totalorder %s16, 0
      %p58 = por %p56, %p57
      %p59 = scmp.ne.s32.totalorder %s45, %s46
      %p60 = scmp.eq.s32.totalorder %s17, 3
      %p61 = por %p59, %p60
      %p63 = scmp.ne.s32.totalorder %s46, %s62
      %p64 = scmp.eq.s32.totalorder %s17, 0
      %p65 = por %p63, %p64
      %s66 = ssub.s32 %s20, %s29
      %s67 = ssub.s32 %s19, %s33
      %s68 = sor.u32 %s66, %s67
      %p69 = scmp.eq.s32.totalorder %s68, 0
      %s71 = sadd.s32 %s70, 1
      %s72 = scalar_select %p69, %s70, %s71
      %p75 = pneg %p69
      %p76 = scmp.eq.s32.totalorder %s11, 3
      %p77 = por %p75, %p76
      %p78 = scmp.ne.s32.totalorder %s70, %s73
      %p79 = scmp.eq.s32.totalorder %s11, 0
      %p80 = por %p78, %p79
      %p81 = scmp.ne.s32.totalorder %s70, %s73
      %p82 = scmp.eq.s32.totalorder %s16, 3
      %p83 = por %p81, %p82
      %p84 = scmp.ne.s32.totalorder %s73, %s74
      %p85 = scmp.eq.s32.totalorder %s16, 0
      %p86 = por %p84, %p85
      %p87 = scmp.ne.s32.totalorder %s73, %s74
      %p88 = scmp.eq.s32.totalorder %s17, 3
      %p89 = por %p87, %p88
      %p91 = scmp.ne.s32.totalorder %s74, %s90
      %p92 = scmp.eq.s32.totalorder %s17, 0
      %p93 = por %p91, %p92
      %s94 = ssub.s32 %s18, %s37
      %s95 = ssub.s32 %s19, %s33
      %s96 = sor.u32 %s94, %s95
      %p97 = scmp.eq.s32.totalorder %s96, 0
      %s99 = sadd.s32 %s98, 1
      %s100 = scalar_select %p97, %s98, %s99
      %p103 = pneg %p97
      %p104 = scmp.eq.s32.totalorder %s11, 3
      %p105 = por %p103, %p104
      %p106 = scmp.ne.s32.totalorder %s98, %s101
      %p107 = scmp.eq.s32.totalorder %s11, 0
      %p108 = por %p106, %p107
      %p109 = scmp.ne.s32.totalorder %s98, %s101
      %p110 = scmp.eq.s32.totalorder %s16, 3
      %p111 = por %p109, %p110
      %p112 = scmp.ne.s32.totalorder %s101, %s102
      %p113 = scmp.eq.s32.totalorder %s16, 0
      %p114 = por %p112, %p113
      %p115 = scmp.ne.s32.totalorder %s101, %s102
      %p116 = scmp.eq.s32.totalorder %s17, 3
      %p117 = por %p115, %p116
      %p119 = scmp.ne.s32.totalorder %s102, %s118
      %p120 = scmp.eq.s32.totalorder %s17, 0
      %p121 = por %p119, %p120
      %p122 = scmp.le.s32.totalorder 1, %s11
      %p123 = scmp.lt.s32.totalorder %s11, 5
      %p124 = pnand %p122, %p123
      %p125 = pneg %p124
      // Predicated region
      $region9: #{conv7x7_s2_p3.1} parent=5 // pred_check
        _
      $region10: #{conv7x7_s2_p3.1} parent=5 // pred_check_branch
        %127 = sbr.rel (%p124) target = $region12
      $region11: #{conv7x7_s2_p3.1} parent=5 // pred_region
        %s128 = ssub.s32 %s11, 1
        // Predicated region
        $region13: #{conv7x7_s2_p3.1} parent=11 // pred_check
          %p129 = pneg %p86
        $region14: #{conv7x7_s2_p3.1} parent=11 // pred_check_branch
          %131 = sbr.rel (%p129) target = $region16
        $region15: #{conv7x7_s2_p3.1} parent=11 // pred_region
          %s132 = smul.u32 32, %s23
          %p133 = scmp.lt.s32.totalorder %s132, 31
          %s134 = scalar_select %p133, %s132, 31
          %p135 = scmp.lt.s32.totalorder %s22, 0
          %s136 = scalar_select %p135, %s22, 0
          %s137 = sadd.s32 %s136, %s134
          %s138 = smul.addr %s137, 4
          %s139 = scalar_lea.vmem %s1, %s138
          %s140 = smul.u32 32, %s23
        $region16: #{conv7x7_s2_p3.1} parent=11 // pred_fallthru
          _
      $region12: #{conv7x7_s2_p3.1} parent=5 // pred_fallthru
        _
      %p141 = scmp.lt.s32.totalorder %s11, 4
      // Predicated region
      $region17: #{conv7x7_s2_p3.1} parent=5 // pred_check
        %p142 = pneg %p141
      $region18: #{conv7x7_s2_p3.1} parent=5 // pred_check_branch
        %144 = sbr.rel (%p142) target = $region20
      $region19: #{conv7x7_s2_p3.1} parent=5 // pred_region
        // Predicated region
        $region21: #{conv7x7_s2_p3.1} parent=19 // pred_check
          %p145 = pneg %p52
        $region22: #{conv7x7_s2_p3.1} parent=19 // pred_check_branch
          %147 = sbr.rel (%p145) target = $region24
        $region23: #{conv7x7_s2_p3.1} parent=19 // pred_region
          %s148 = smul.u32 64, %s18
          %s149 = smul.u32 2, %s20
          %p150 = scmp.lt.s32.totalorder %s148, 255
          %s151 = scalar_select %p150, %s148, 255
          %p152 = scmp.lt.s32.totalorder %s149, 1
          %s153 = scalar_select %p152, %s149, 1
          %s154 = smul.addr %s151, 2
          %s155 = sadd.s32 %s153, %s154
          %s156 = smul.addr %s155, 4
          %s157 = scalar_lea.vmem %s0, %s156
          %s158 = smul.u32 64, %s18
          %s159 = smul.u32 2, %s20
        $region24: #{conv7x7_s2_p3.1} parent=19 // pred_fallthru
          _
      $region20: #{conv7x7_s2_p3.1} parent=5 // pred_fallthru
        _
      %p160 = scmp.le.s32.totalorder 1, %s11
      %p161 = scmp.lt.s32.totalorder %s11, 5
      %p162 = pnand %p160, %p161
      %p163 = pneg %p162
      // Predicated region
      $region25: #{conv7x7_s2_p3.1} parent=5 // pred_check
        _
      $region26: #{conv7x7_s2_p3.1} parent=5 // pred_check_branch
        %165 = sbr.rel (%p162) target = $region28
      $region27: #{conv7x7_s2_p3.1} parent=5 // pred_region
        %s166 = ssub.s32 %s11, 1
        %s167 = smul.u32 64, %s21
        %s168 = smul.u32 2, %s23
        %p169 = scmp.lt.s32.totalorder %s167, 255
        %s170 = scalar_select %p169, %s167, 255
        %p171 = scmp.lt.s32.totalorder %s168, 1
        %s172 = scalar_select %p171, %s168, 1
        %s173 = smul.addr %s170, 2
        %s174 = sadd.s32 %s172, %s173
        %s175 = smul.addr %s174, 4
        %s176 = scalar_lea.vmem %s0, %s175
        %p177 = pneg %p58
        %p178 = pneg %p55
        %s179 = smul.u32 32, %s23
        %p180 = scmp.lt.s32.totalorder %s179, 31
        %s181 = scalar_select %p180, %s179, 31
        %p182 = scmp.lt.s32.totalorder %s22, 0
        %s183 = scalar_select %p182, %s22, 0
        %s184 = sadd.s32 %s183, %s181
        %s185 = smul.addr %s184, 4
        %s186 = scalar_lea.vmem %s1, %s185
        %p187 = pneg %p86
        %p188 = pneg %p83
        %p189 = pneg %p114
        %p190 = pneg %p111
        %s191 = sand.u32 %s101, 1
        %s192 = scalar_lea.sflag [#allocation3], %s191
        %s193 = sand.u32 %s101, 1
        %s194 = smul.addr %s193, 512
        %s195 = scalar_lea.vmem [#allocation2], %s194
        %s196 = smul.u32 64, %s21
        %s197 = smul.u32 2, %s23
        %p198 = scmp.lt.s32.totalorder %s196, 255
        %s199 = scalar_select %p198, %s196, 255
        %p200 = scmp.lt.s32.totalorder %s197, 1
        %s201 = scalar_select %p200, %s197, 1
        %s202 = smul.addr %s199, 2
        %s203 = sadd.s32 %s201, %s202
        %s204 = smul.addr %s203, 4
        %s205 = scalar_lea.vmem %s0, %s204
        %s206 = smul.u32 64, %s21
        %s207 = smul.u32 2, %s23
        %s208 = smul.u32 32, %s23
        %p209 = scmp.lt.s32.totalorder %s208, 31
        %s210 = scalar_select %p209, %s208, 31
        %p211 = scmp.lt.s32.totalorder %s22, 0
        %s212 = scalar_select %p211, %s22, 0
        %s213 = sadd.s32 %s212, %s210
        %s214 = smul.addr %s213, 4
        %s215 = scalar_lea.vmem %s1, %s214
        %s216 = smul.u32 32, %s23
        %s217 = smul.u32 64, %s21
        %p219 = scmp.eq.s32.totalorder %s23, 0
        // Predicated region
        $region29: #{conv7x7_s2_p3.1} parent=27 // pred_check
          %p220 = pneg %p219
        $region30: #{conv7x7_s2_p3.1} parent=27 // pred_check_branch
          %222 = sbr.rel (%p220) target = $region32
        $region31: #{conv7x7_s2_p3.1} parent=27 // pred_region
          %223 = vst [vmem:[%s195] sm:$0xff] 0.0
          %224 = vst [vmem:[%s195 + $0x8] sm:$0xff] 0.0
          %225 = vst [vmem:[%s195 + $0x10] sm:$0xff] 0.0
          %226 = vst [vmem:[%s195 + $0x18] sm:$0xff] 0.0
          %227 = vst [vmem:[%s195 + $0x20] sm:$0xff] 0.0
          %228 = vst [vmem:[%s195 + $0x28] sm:$0xff] 0.0
          %229 = vst [vmem:[%s195 + $0x30] sm:$0xff] 0.0
          %230 = vst [vmem:[%s195 + $0x38] sm:$0xff] 0.0
          %231 = vst [vmem:[%s195 + $0x40] sm:$0xff] 0.0
          %232 = vst [vmem:[%s195 + $0x48] sm:$0xff] 0.0
          %233 = vst [vmem:[%s195 + $0x50] sm:$0xff] 0.0
          %234 = vst [vmem:[%s195 + $0x58] sm:$0xff] 0.0
          %235 = vst [vmem:[%s195 + $0x60] sm:$0xff] 0.0
          %236 = vst [vmem:[%s195 + $0x68] sm:$0xff] 0.0
          %237 = vst [vmem:[%s195 + $0x70] sm:$0xff] 0.0
          %238 = vst [vmem:[%s195 + $0x78] sm:$0xff] 0.0
          %239 = vst [vmem:[%s195 + $0x80] sm:$0xff] 0.0
          %240 = vst [vmem:[%s195 + $0x88] sm:$0xff] 0.0
          %241 = vst [vmem:[%s195 + $0x90] sm:$0xff] 0.0
          %242 = vst [vmem:[%s195 + $0x98] sm:$0xff] 0.0
          %243 = vst [vmem:[%s195 + $0xa0] sm:$0xff] 0.0
          %244 = vst [vmem:[%s195 + $0xa8] sm:$0xff] 0.0
          %245 = vst [vmem:[%s195 + $0xb0] sm:$0xff] 0.0
          %246 = vst [vmem:[%s195 + $0xb8] sm:$0xff] 0.0
          %247 = vst [vmem:[%s195 + $0xc0] sm:$0xff] 0.0
          %248 = vst [vmem:[%s195 + $0xc8] sm:$0xff] 0.0
          %249 = vst [vmem:[%s195 + $0xd0] sm:$0xff] 0.0
          %250 = vst [vmem:[%s195 + $0xd8] sm:$0xff] 0.0
          %251 = vst [vmem:[%s195 + $0xe0] sm:$0xff] 0.0
          %252 = vst [vmem:[%s195 + $0xe8] sm:$0xff] 0.0
          %253 = vst [vmem:[%s195 + $0xf0] sm:$0xff] 0.0
          %254 = vst [vmem:[%s195 + $0xf8] sm:$0xff] 0.0
          %255 = vst [vmem:[%s195 + $0x100] sm:$0xff] 0.0
          %256 = vst [vmem:[%s195 + $0x108] sm:$0xff] 0.0
          %257 = vst [vmem:[%s195 + $0x110] sm:$0xff] 0.0
          %258 = vst [vmem:[%s195 + $0x118] sm:$0xff] 0.0
          %259 = vst [vmem:[%s195 + $0x120] sm:$0xff] 0.0
          %260 = vst [vmem:[%s195 + $0x128] sm:$0xff] 0.0
          %261 = vst [vmem:[%s195 + $0x130] sm:$0xff] 0.0
          %262 = vst [vmem:[%s195 + $0x138] sm:$0xff] 0.0
          %263 = vst [vmem:[%s195 + $0x140] sm:$0xff] 0.0
          %264 = vst [vmem:[%s195 + $0x148] sm:$0xff] 0.0
          %265 = vst [vmem:[%s195 + $0x150] sm:$0xff] 0.0
          %266 = vst [vmem:[%s195 + $0x158] sm:$0xff] 0.0
          %267 = vst [vmem:[%s195 + $0x160] sm:$0xff] 0.0
          %268 = vst [vmem:[%s195 + $0x168] sm:$0xff] 0.0
          %269 = vst [vmem:[%s195 + $0x170] sm:$0xff] 0.0
          %270 = vst [vmem:[%s195 + $0x178] sm:$0xff] 0.0
          %271 = vst [vmem:[%s195 + $0x180] sm:$0xff] 0.0
          %272 = vst [vmem:[%s195 + $0x188] sm:$0xff] 0.0
          %273 = vst [vmem:[%s195 + $0x190] sm:$0xff] 0.0
          %274 = vst [vmem:[%s195 + $0x198] sm:$0xff] 0.0
          %275 = vst [vmem:[%s195 + $0x1a0] sm:$0xff] 0.0
          %276 = vst [vmem:[%s195 + $0x1a8] sm:$0xff] 0.0
          %277 = vst [vmem:[%s195 + $0x1b0] sm:$0xff] 0.0
          %278 = vst [vmem:[%s195 + $0x1b8] sm:$0xff] 0.0
          %279 = vst [vmem:[%s195 + $0x1c0] sm:$0xff] 0.0
          %280 = vst [vmem:[%s195 + $0x1c8] sm:$0xff] 0.0
          %281 = vst [vmem:[%s195 + $0x1d0] sm:$0xff] 0.0
          %282 = vst [vmem:[%s195 + $0x1d8] sm:$0xff] 0.0
          %283 = vst [vmem:[%s195 + $0x1e0] sm:$0xff] 0.0
          %284 = vst [vmem:[%s195 + $0x1e8] sm:$0xff] 0.0
          %285 = vst [vmem:[%s195 + $0x1f0] sm:$0xff] 0.0
          %286 = vst [vmem:[%s195 + $0x1f8] sm:$0xff] 0.0
        $region32: #{conv7x7_s2_p3.1} parent=27 // pred_fallthru
          _
        %v287 = vld [vmem:[%s195] sm:$0xff]
        %v288 = vld [vmem:[%s195 + $0x8] sm:$0xff]
        %v289 = vld [vmem:[%s195 + $0x10] sm:$0xff]
        %v290 = vld [vmem:[%s195 + $0x18] sm:$0xff]
        %v291 = vld [vmem:[%s195 + $0x20] sm:$0xff]
        %v292 = vld [vmem:[%s195 + $0x28] sm:$0xff]
        %v293 = vld [vmem:[%s195 + $0x30] sm:$0xff]
        %v294 = vld [vmem:[%s195 + $0x38] sm:$0xff]
        %v295 = vld [vmem:[%s195 + $0x40] sm:$0xff]
        %v296 = vld [vmem:[%s195 + $0x48] sm:$0xff]
        %v297 = vld [vmem:[%s195 + $0x50] sm:$0xff]
        %v298 = vld [vmem:[%s195 + $0x58] sm:$0xff]
        %v299 = vld [vmem:[%s195 + $0x60] sm:$0xff]
        %v300 = vld [vmem:[%s195 + $0x68] sm:$0xff]
        %v301 = vld [vmem:[%s195 + $0x70] sm:$0xff]
        %v302 = vld [vmem:[%s195 + $0x78] sm:$0xff]
        %v303 = vld [vmem:[%s195 + $0x80] sm:$0xff]
        %v304 = vld [vmem:[%s195 + $0x88] sm:$0xff]
        %v305 = vld [vmem:[%s195 + $0x90] sm:$0xff]
        %v306 = vld [vmem:[%s195 + $0x98] sm:$0xff]
        %v307 = vld [vmem:[%s195 + $0xa0] sm:$0xff]
        %v308 = vld [vmem:[%s195 + $0xa8] sm:$0xff]
        %v309 = vld [vmem:[%s195 + $0xb0] sm:$0xff]
        %v310 = vld [vmem:[%s195 + $0xb8] sm:$0xff]
        %v311 = vld [vmem:[%s195 + $0xc0] sm:$0xff]
        %v312 = vld [vmem:[%s195 + $0xc8] sm:$0xff]
        %v313 = vld [vmem:[%s195 + $0xd0] sm:$0xff]
        %v314 = vld [vmem:[%s195 + $0xd8] sm:$0xff]
        %v315 = vld [vmem:[%s195 + $0xe0] sm:$0xff]
        %v316 = vld [vmem:[%s195 + $0xe8] sm:$0xff]
        %v317 = vld [vmem:[%s195 + $0xf0] sm:$0xff]
        %v318 = vld [vmem:[%s195 + $0xf8] sm:$0xff]
        %v319 = vld [vmem:[%s195 + $0x100] sm:$0xff]
        %v320 = vld [vmem:[%s195 + $0x108] sm:$0xff]
        %v321 = vld [vmem:[%s195 + $0x110] sm:$0xff]
        %v322 = vld [vmem:[%s195 + $0x118] sm:$0xff]
        %v323 = vld [vmem:[%s195 + $0x120] sm:$0xff]
        %v324 = vld [vmem:[%s195 + $0x128] sm:$0xff]
        %v325 = vld [vmem:[%s195 + $0x130] sm:$0xff]
        %v326 = vld [vmem:[%s195 + $0x138] sm:$0xff]
        %v327 = vld [vmem:[%s195 + $0x140] sm:$0xff]
        %v328 = vld [vmem:[%s195 + $0x148] sm:$0xff]
        %v329 = vld [vmem:[%s195 + $0x150] sm:$0xff]
        %v330 = vld [vmem:[%s195 + $0x158] sm:$0xff]
        %v331 = vld [vmem:[%s195 + $0x160] sm:$0xff]
        %v332 = vld [vmem:[%s195 + $0x168] sm:$0xff]
        %v333 = vld [vmem:[%s195 + $0x170] sm:$0xff]
        %v334 = vld [vmem:[%s195 + $0x178] sm:$0xff]
        %v335 = vld [vmem:[%s195 + $0x180] sm:$0xff]
        %v336 = vld [vmem:[%s195 + $0x188] sm:$0xff]
        %v337 = vld [vmem:[%s195 + $0x190] sm:$0xff]
        %v338 = vld [vmem:[%s195 + $0x198] sm:$0xff]
        %v339 = vld [vmem:[%s195 + $0x1a0] sm:$0xff]
        %v340 = vld [vmem:[%s195 + $0x1a8] sm:$0xff]
        %v341 = vld [vmem:[%s195 + $0x1b0] sm:$0xff]
        %v342 = vld [vmem:[%s195 + $0x1b8] sm:$0xff]
        %v343 = vld [vmem:[%s195 + $0x1c0] sm:$0xff]
        %v344 = vld [vmem:[%s195 + $0x1c8] sm:$0xff]
        %v345 = vld [vmem:[%s195 + $0x1d0] sm:$0xff]
        %v346 = vld [vmem:[%s195 + $0x1d8] sm:$0xff]
        %v347 = vld [vmem:[%s195 + $0x1e0] sm:$0xff]
        %v348 = vld [vmem:[%s195 + $0x1e8] sm:$0xff]
        %v349 = vld [vmem:[%s195 + $0x1f0] sm:$0xff]
        %v350 = vld [vmem:[%s195 + $0x1f8] sm:$0xff]
        %v351 = vld [vmem:[%s205] sm:$0xff]
        %v352 = vld [vmem:[%s205 + $0x8] sm:$0xff]
        %v353 = vld [vmem:[%s205 + $0x10] sm:$0xff]
        %v354 = vld [vmem:[%s205 + $0x18] sm:$0xff]
        %v355 = vld [vmem:[%s205 + $0x20] sm:$0xff]
        %v356 = vld [vmem:[%s205 + $0x28] sm:$0xff]
        %v357 = vld [vmem:[%s205 + $0x30] sm:$0xff]
        %v358 = vld [vmem:[%s205 + $0x38] sm:$0xff]
        %v359 = vld [vmem:[%s205 + $0x40] sm:$0xff]
        %v360 = vld [vmem:[%s205 + $0x48] sm:$0xff]
        %v361 = vld [vmem:[%s205 + $0x50] sm:$0xff]
        %v362 = vld [vmem:[%s205 + $0x58] sm:$0xff]
        %v363 = vld [vmem:[%s205 + $0x60] sm:$0xff]
        %v364 = vld [vmem:[%s205 + $0x68] sm:$0xff]
        %v365 = vld [vmem:[%s205 + $0x70] sm:$0xff]
        %v366 = vld [vmem:[%s205 + $0x78] sm:$0xff]
        %v367 = vld [vmem:[%s205 + $0x80] sm:$0xff]
        %v368 = vld [vmem:[%s205 + $0x88] sm:$0xff]
        %v369 = vld [vmem:[%s205 + $0x90] sm:$0xff]
        %v370 = vld [vmem:[%s205 + $0x98] sm:$0xff]
        %v371 = vld [vmem:[%s205 + $0xa0] sm:$0xff]
        %v372 = vld [vmem:[%s205 + $0xa8] sm:$0xff]
        %v373 = vld [vmem:[%s205 + $0xb0] sm:$0xff]
        %v374 = vld [vmem:[%s205 + $0xb8] sm:$0xff]
        %v375 = vld [vmem:[%s205 + $0xc0] sm:$0xff]
        %v376 = vld [vmem:[%s205 + $0xc8] sm:$0xff]
        %v377 = vld [vmem:[%s205 + $0xd0] sm:$0xff]
        %v378 = vld [vmem:[%s205 + $0xd8] sm:$0xff]
        %v379 = vld [vmem:[%s205 + $0xe0] sm:$0xff]
        %v380 = vld [vmem:[%s205 + $0xe8] sm:$0xff]
        %v381 = vld [vmem:[%s205 + $0xf0] sm:$0xff]
        %v382 = vld [vmem:[%s205 + $0xf8] sm:$0xff]
        %v383 = vld [vmem:[%s205 + $0x100] sm:$0xff]
        %v384 = vld [vmem:[%s205 + $0x108] sm:$0xff]
        %v385 = vld [vmem:[%s205 + $0x110] sm:$0xff]
        %v386 = vld [vmem:[%s205 + $0x118] sm:$0xff]
        %v387 = vld [vmem:[%s205 + $0x120] sm:$0xff]
        %v388 = vld [vmem:[%s205 + $0x128] sm:$0xff]
        %v389 = vld [vmem:[%s205 + $0x130] sm:$0xff]
        %v390 = vld [vmem:[%s205 + $0x138] sm:$0xff]
        %v391 = vld [vmem:[%s205 + $0x140] sm:$0xff]
        %v392 = vld [vmem:[%s205 + $0x148] sm:$0xff]
        %v393 = vld [vmem:[%s205 + $0x150] sm:$0xff]
        %v394 = vld [vmem:[%s205 + $0x158] sm:$0xff]
        %v395 = vld [vmem:[%s205 + $0x160] sm:$0xff]
        %v396 = vld [vmem:[%s205 + $0x168] sm:$0xff]
        %v397 = vld [vmem:[%s205 + $0x170] sm:$0xff]
        %v398 = vld [vmem:[%s205 + $0x178] sm:$0xff]
        %v399 = vld [vmem:[%s205 + $0x180] sm:$0xff]
        %v400 = vld [vmem:[%s205 + $0x188] sm:$0xff]
        %v401 = vld [vmem:[%s205 + $0x190] sm:$0xff]
        %v402 = vld [vmem:[%s205 + $0x198] sm:$0xff]
        %v403 = vld [vmem:[%s205 + $0x1a0] sm:$0xff]
        %v404 = vld [vmem:[%s205 + $0x1a8] sm:$0xff]
        %v405 = vld [vmem:[%s205 + $0x1b0] sm:$0xff]
        %v406 = vld [vmem:[%s205 + $0x1b8] sm:$0xff]
        %v407 = vld [vmem:[%s205 + $0x1c0] sm:$0xff]
        %v408 = vld [vmem:[%s205 + $0x1c8] sm:$0xff]
        %v409 = vld [vmem:[%s205 + $0x1d0] sm:$0xff]
        %v410 = vld [vmem:[%s205 + $0x1d8] sm:$0xff]
        %v411 = vld [vmem:[%s205 + $0x1e0] sm:$0xff]
        %v412 = vld [vmem:[%s205 + $0x1e8] sm:$0xff]
        %v413 = vld [vmem:[%s205 + $0x1f0] sm:$0xff]
        %v414 = vld [vmem:[%s205 + $0x1f8] sm:$0xff]
        %v415 = vld [vmem:[%s215] sm:$0xf]
        %v416 = vld [vmem:[%s215 + $0x4] sm:$0xf]
        %v417 = vld [vmem:[%s215 + $0x8] sm:$0xf]
        %v418 = vld [vmem:[%s215 + $0xc] sm:$0xf]
        %v419 = vld [vmem:[%s215 + $0x10] sm:$0xf]
        %v420 = vld [vmem:[%s215 + $0x14] sm:$0xf]
        %v421 = vld [vmem:[%s215 + $0x18] sm:$0xf]
        %v422 = vld [vmem:[%s215 + $0x1c] sm:$0xf]
        %v423 = vld [vmem:[%s215 + $0x20] sm:$0xf]
        %v424 = vld [vmem:[%s215 + $0x24] sm:$0xf]
        %v425 = vld [vmem:[%s215 + $0x28] sm:$0xf]
        %v426 = vld [vmem:[%s215 + $0x2c] sm:$0xf]
        %v427 = vld [vmem:[%s215 + $0x30] sm:$0xf]
        %v428 = vld [vmem:[%s215 + $0x34] sm:$0xf]
        %v429 = vld [vmem:[%s215 + $0x38] sm:$0xf]
        %v430 = vld [vmem:[%s215 + $0x3c] sm:$0xf]
        %v431 = vld [vmem:[%s215 + $0x40] sm:$0xf]
        %v432 = vld [vmem:[%s215 + $0x44] sm:$0xf]
        %v433 = vld [vmem:[%s215 + $0x48] sm:$0xf]
        %v434 = vld [vmem:[%s215 + $0x4c] sm:$0xf]
        %v435 = vld [vmem:[%s215 + $0x50] sm:$0xf]
        %v436 = vld [vmem:[%s215 + $0x54] sm:$0xf]
        %v437 = vld [vmem:[%s215 + $0x58] sm:$0xf]
        %v438 = vld [vmem:[%s215 + $0x5c] sm:$0xf]
        %v439 = vld [vmem:[%s215 + $0x60] sm:$0xf]
        %v440 = vld [vmem:[%s215 + $0x64] sm:$0xf]
        %v441 = vld [vmem:[%s215 + $0x68] sm:$0xf]
        %v442 = vld [vmem:[%s215 + $0x6c] sm:$0xf]
        %v443 = vld [vmem:[%s215 + $0x70] sm:$0xf]
        %v444 = vld [vmem:[%s215 + $0x74] sm:$0xf]
        %v445 = vld [vmem:[%s215 + $0x78] sm:$0xf]
        %v446 = vld [vmem:[%s215 + $0x7c] sm:$0xf]
        %v511 = vunpack.c.l.b16 %v351
        %v512 = vunpack.c.h.b16 %v351
        %v513 = vunpack.c.l.b16 %v352
        %v514 = vunpack.c.h.b16 %v352
        %v515 = vunpack.c.l.b16 %v353
        %v516 = vunpack.c.h.b16 %v353
        %v517 = vunpack.c.l.b16 %v354
        %v518 = vunpack.c.h.b16 %v354
        %v519 = vunpack.c.l.b16 %v355
        %v520 = vunpack.c.h.b16 %v355
        %v521 = vunpack.c.l.b16 %v356
        %v522 = vunpack.c.h.b16 %v356
        %v523 = vunpack.c.l.b16 %v357
        %v524 = vunpack.c.h.b16 %v357
        %v525 = vunpack.c.l.b16 %v358
        %v526 = vunpack.c.h.b16 %v358
        %v527 = vunpack.c.l.b16 %v359
        %v528 = vunpack.c.h.b16 %v359
        %v529 = vunpack.c.l.b16 %v360
        %v530 = vunpack.c.h.b16 %v360
        %v531 = vunpack.c.l.b16 %v361
        %v532 = vunpack.c.h.b16 %v361
        %v533 = vunpack.c.l.b16 %v362
        %v534 = vunpack.c.h.b16 %v362
        %v535 = vunpack.c.l.b16 %v363
        %v536 = vunpack.c.h.b16 %v363
        %v537 = vunpack.c.l.b16 %v364
        %v538 = vunpack.c.h.b16 %v364
        %v539 = vunpack.c.l.b16 %v365
        %v540 = vunpack.c.h.b16 %v365
        %v541 = vunpack.c.l.b16 %v366
        %v542 = vunpack.c.h.b16 %v366
        %v543 = vunpack.c.l.b16 %v367
        %v544 = vunpack.c.h.b16 %v367
        %v545 = vunpack.c.l.b16 %v368
        %v546 = vunpack.c.h.b16 %v368
        %v547 = vunpack.c.l.b16 %v369
        %v548 = vunpack.c.h.b16 %v369
        %v549 = vunpack.c.l.b16 %v370
        %v550 = vunpack.c.h.b16 %v370
        %v551 = vunpack.c.l.b16 %v371
        %v552 = vunpack.c.h.b16 %v371
        %v553 = vunpack.c.l.b16 %v372
        %v554 = vunpack.c.h.b16 %v372
        %v555 = vunpack.c.l.b16 %v373
        %v556 = vunpack.c.h.b16 %v373
        %v557 = vunpack.c.l.b16 %v374
        %v558 = vunpack.c.h.b16 %v374
        %v559 = vunpack.c.l.b16 %v375
        %v560 = vunpack.c.h.b16 %v375
        %v561 = vunpack.c.l.b16 %v376
        %v562 = vunpack.c.h.b16 %v376
        %v563 = vunpack.c.l.b16 %v377
        %v564 = vunpack.c.h.b16 %v377
        %v565 = vunpack.c.l.b16 %v378
        %v566 = vunpack.c.h.b16 %v378
        %v567 = vunpack.c.l.b16 %v379
        %v568 = vunpack.c.h.b16 %v379
        %v569 = vunpack.c.l.b16 %v380
        %v570 = vunpack.c.h.b16 %v380
        %v571 = vunpack.c.l.b16 %v381
        %v572 = vunpack.c.h.b16 %v381
        %v573 = vunpack.c.l.b16 %v382
        %v574 = vunpack.c.h.b16 %v382
        %v575 = vunpack.c.l.b16 %v383
        %v576 = vunpack.c.h.b16 %v383
        %v577 = vunpack.c.l.b16 %v384
        %v578 = vunpack.c.h.b16 %v384
        %v579 = vunpack.c.l.b16 %v385
        %v580 = vunpack.c.h.b16 %v385
        %v581 = vunpack.c.l.b16 %v386
        %v582 = vunpack.c.h.b16 %v386
        %v583 = vunpack.c.l.b16 %v387
        %v584 = vunpack.c.h.b16 %v387
        %v585 = vunpack.c.l.b16 %v388
        %v586 = vunpack.c.h.b16 %v388
        %v587 = vunpack.c.l.b16 %v389
        %v588 = vunpack.c.h.b16 %v389
        %v589 = vunpack.c.l.b16 %v390
        %v590 = vunpack.c.h.b16 %v390
        %v591 = vunpack.c.l.b16 %v391
        %v592 = vunpack.c.h.b16 %v391
        %v593 = vunpack.c.l.b16 %v392
        %v594 = vunpack.c.h.b16 %v392
        %v595 = vunpack.c.l.b16 %v393
        %v596 = vunpack.c.h.b16 %v393
        %v597 = vunpack.c.l.b16 %v394
        %v598 = vunpack.c.h.b16 %v394
        %v599 = vunpack.c.l.b16 %v395
        %v600 = vunpack.c.h.b16 %v395
        %v601 = vunpack.c.l.b16 %v396
        %v602 = vunpack.c.h.b16 %v396
        %v603 = vunpack.c.l.b16 %v397
        %v604 = vunpack.c.h.b16 %v397
        %v605 = vunpack.c.l.b16 %v398
        %v606 = vunpack.c.h.b16 %v398
        %v607 = vunpack.c.l.b16 %v399
        %v608 = vunpack.c.h.b16 %v399
        %v609 = vunpack.c.l.b16 %v400
        %v610 = vunpack.c.h.b16 %v400
        %v611 = vunpack.c.l.b16 %v401
        %v612 = vunpack.c.h.b16 %v401
        %v613 = vunpack.c.l.b16 %v402
        %v614 = vunpack.c.h.b16 %v402
        %v615 = vunpack.c.l.b16 %v403
        %v616 = vunpack.c.h.b16 %v403
        %v617 = vunpack.c.l.b16 %v404
        %v618 = vunpack.c.h.b16 %v404
        %v619 = vunpack.c.l.b16 %v405
        %v620 = vunpack.c.h.b16 %v405
        %v621 = vunpack.c.l.b16 %v406
        %v622 = vunpack.c.h.b16 %v406
        %v623 = vunpack.c.l.b16 %v407
        %v624 = vunpack.c.h.b16 %v407
        %v625 = vunpack.c.l.b16 %v408
        %v626 = vunpack.c.h.b16 %v408
        %v627 = vunpack.c.l.b16 %v409
        %v628 = vunpack.c.h.b16 %v409
        %v629 = vunpack.c.l.b16 %v410
        %v630 = vunpack.c.h.b16 %v410
        %v631 = vunpack.c.l.b16 %v411
        %v632 = vunpack.c.h.b16 %v411
        %v633 = vunpack.c.l.b16 %v412
        %v634 = vunpack.c.h.b16 %v412
        %v635 = vunpack.c.l.b16 %v413
        %v636 = vunpack.c.h.b16 %v413
        %v637 = vunpack.c.l.b16 %v414
        %v638 = vunpack.c.h.b16 %v414
        %v639 = vpack.c.b16 %v513, %v511
        %v640 = vpack.c.b16 %v514, %v512
        %v641 = vpack.c.b16 %v517, %v515
        %v642 = vpack.c.b16 %v518, %v516
        %v643 = vpack.c.b16 %v521, %v519
        %v644 = vpack.c.b16 %v522, %v520
        %v645 = vpack.c.b16 %v525, %v523
        %v646 = vpack.c.b16 %v526, %v524
        %v647 = vpack.c.b16 %v529, %v527
        %v648 = vpack.c.b16 %v530, %v528
        %v649 = vpack.c.b16 %v533, %v531
        %v650 = vpack.c.b16 %v534, %v532
        %v651 = vpack.c.b16 %v537, %v535
        %v652 = vpack.c.b16 %v538, %v536
        %v653 = vpack.c.b16 %v541, %v539
        %v654 = vpack.c.b16 %v542, %v540
        %v655 = vpack.c.b16 %v545, %v543
        %v656 = vpack.c.b16 %v546, %v544
        %v657 = vpack.c.b16 %v549, %v547
        %v658 = vpack.c.b16 %v550, %v548
        %v659 = vpack.c.b16 %v553, %v551
        %v660 = vpack.c.b16 %v554, %v552
        %v661 = vpack.c.b16 %v557, %v555
        %v662 = vpack.c.b16 %v558, %v556
        %v663 = vpack.c.b16 %v561, %v559
        %v664 = vpack.c.b16 %v562, %v560
        %v665 = vpack.c.b16 %v565, %v563
        %v666 = vpack.c.b16 %v566, %v564
        %v667 = vpack.c.b16 %v569, %v567
        %v668 = vpack.c.b16 %v570, %v568
        %v669 = vpack.c.b16 %v573, %v571
        %v670 = vpack.c.b16 %v574, %v572
        %v671 = vpack.c.b16 %v577, %v575
        %v672 = vpack.c.b16 %v578, %v576
        %v673 = vpack.c.b16 %v581, %v579
        %v674 = vpack.c.b16 %v582, %v580
        %v675 = vpack.c.b16 %v585, %v583
        %v676 = vpack.c.b16 %v586, %v584
        %v677 = vpack.c.b16 %v589, %v587
        %v678 = vpack.c.b16 %v590, %v588
        %v679 = vpack.c.b16 %v593, %v591
        %v680 = vpack.c.b16 %v594, %v592
        %v681 = vpack.c.b16 %v597, %v595
        %v682 = vpack.c.b16 %v598, %v596
        %v683 = vpack.c.b16 %v601, %v599
        %v684 = vpack.c.b16 %v602, %v600
        %v685 = vpack.c.b16 %v605, %v603
        %v686 = vpack.c.b16 %v606, %v604
        %v687 = vpack.c.b16 %v609, %v607
        %v688 = vpack.c.b16 %v610, %v608
        %v689 = vpack.c.b16 %v613, %v611
        %v690 = vpack.c.b16 %v614, %v612
        %v691 = vpack.c.b16 %v617, %v615
        %v692 = vpack.c.b16 %v618, %v616
        %v693 = vpack.c.b16 %v621, %v619
        %v694 = vpack.c.b16 %v622, %v620
        %v695 = vpack.c.b16 %v625, %v623
        %v696 = vpack.c.b16 %v626, %v624
        %v697 = vpack.c.b16 %v629, %v627
        %v698 = vpack.c.b16 %v630, %v628
        %v699 = vpack.c.b16 %v633, %v631
        %v700 = vpack.c.b16 %v634, %v632
        %v701 = vpack.c.b16 %v637, %v635
        %v702 = vpack.c.b16 %v638, %v636
        %v799 = vunpack.c.l.b16 %v415
        %v800 = vunpack.c.l.b16 %v416
        %v801 = vunpack.c.l.b16 %v417
        %v802 = vunpack.c.l.b16 %v418
        %v803 = vunpack.c.l.b16 %v419
        %v804 = vunpack.c.l.b16 %v420
        %v805 = vunpack.c.l.b16 %v421
        %v806 = vunpack.c.l.b16 %v422
        %v807 = vunpack.c.l.b16 %v423
        %v808 = vunpack.c.l.b16 %v424
        %v809 = vunpack.c.l.b16 %v425
        %v810 = vunpack.c.l.b16 %v426
        %v811 = vunpack.c.l.b16 %v427
        %v812 = vunpack.c.l.b16 %v428
        %v813 = vunpack.c.l.b16 %v429
        %v814 = vunpack.c.l.b16 %v430
        %v815 = vunpack.c.l.b16 %v431
        %v816 = vunpack.c.l.b16 %v432
        %v817 = vunpack.c.l.b16 %v433
        %v818 = vunpack.c.l.b16 %v434
        %v819 = vunpack.c.l.b16 %v435
        %v820 = vunpack.c.l.b16 %v436
        %v821 = vunpack.c.l.b16 %v437
        %v822 = vunpack.c.l.b16 %v438
        %v823 = vunpack.c.l.b16 %v439
        %v824 = vunpack.c.l.b16 %v440
        %v825 = vunpack.c.l.b16 %v441
        %v826 = vunpack.c.l.b16 %v442
        %v827 = vunpack.c.l.b16 %v443
        %v828 = vunpack.c.l.b16 %v444
        %v829 = vunpack.c.l.b16 %v445
        %v830 = vunpack.c.l.b16 %v446
        %v831 = vpack.c.b16 %v800, %v799
        %v832 = vpack.c.b16 %v802, %v801
        %v833 = vpack.c.b16 %v804, %v803
        %v834 = vpack.c.b16 %v806, %v805
        %v835 = vpack.c.b16 %v808, %v807
        %v836 = vpack.c.b16 %v810, %v809
        %v837 = vpack.c.b16 %v812, %v811
        %v838 = vpack.c.b16 %v814, %v813
        %v839 = vpack.c.b16 %v816, %v815
        %v840 = vpack.c.b16 %v818, %v817
        %v841 = vpack.c.b16 %v820, %v819
        %v842 = vpack.c.b16 %v822, %v821
        %v843 = vpack.c.b16 %v824, %v823
        %v844 = vpack.c.b16 %v826, %v825
        %v845 = vpack.c.b16 %v828, %v827
        %v846 = vpack.c.b16 %v830, %v829
        %863 = vmatprep.subr.bf16.mxu0 0
        %864 = vmatpush1.bf16.msra.mxu0 %v831
        %865 = vmatprep.subr.bf16.mxu0 0
        %866 = vmatpush1.bf16.msra.mxu0 %v832
        %867 = vmatprep.subr.bf16.mxu0 0
        %868 = vmatpush1.bf16.msra.mxu0 %v833
        %869 = vmatprep.subr.bf16.mxu0 0
        %870 = vmatpush1.bf16.msra.mxu0 %v834
        %871 = vmatprep.subr.bf16.mxu0 0
        %872 = vmatpush1.bf16.msra.mxu0 %v835
        %873 = vmatprep.subr.bf16.mxu0 0
        %874 = vmatpush1.bf16.msra.mxu0 %v836
        %875 = vmatprep.subr.bf16.mxu0 0
        %876 = vmatpush1.bf16.msra.mxu0 %v837
        %877 = vmatprep.subr.bf16.mxu0 0
        %878 = vmatpush1.bf16.msra.mxu0 %v838
        %879 = vmatprep.subr.bf16.mxu0 0
        %880 = vmatpush1.bf16.msra.mxu0 %v839
        %881 = vmatprep.subr.bf16.mxu0 0
        %882 = vmatpush1.bf16.msra.mxu0 %v840
        %883 = vmatprep.subr.bf16.mxu0 0
        %884 = vmatpush1.bf16.msra.mxu0 %v841
        %885 = vmatprep.subr.bf16.mxu0 0
        %886 = vmatpush1.bf16.msra.mxu0 %v842
        %887 = vmatprep.subr.bf16.mxu0 0
        %888 = vmatpush1.bf16.msra.mxu0 %v843
        %889 = vmatprep.subr.bf16.mxu0 0
        %890 = vmatpush1.bf16.msra.mxu0 %v844
        %891 = vmatprep.subr.bf16.mxu0 0
        %892 = vmatpush1.bf16.msra.mxu0 %v845
        %893 = vmatprep.subr.bf16.mxu0 0
        %894 = vmatpush1.bf16.msra.mxu0 %v846
        %895 = vmatprep.mubr.bf16.mxu0 %v640
        %896 = vmatmul.mubr.bf16.gmra.mrb[0].mxu0 %v639
        %v897 = vpop.f32.mrb[0].mxu0
        %v898 = vadd.f32 0.0, %v897
        %v899 = vpop.f32.mrb[0].mxu0
        %v900 = vpop.f32.mrb[0].mxu0
        %v901 = vadd.f32 0.0, %v900
        %v902 = vpop.f32.mrb[0].mxu0
        %903 = vmatprep.mubr.bf16.mxu0 %v642
        %904 = vmatmul.mubr.bf16.gmra.mrb[0].mxu0 %v641
        %v905 = vpop.f32.mrb[0].mxu0
        %v906 = vadd.f32 0.0, %v905
        %v907 = vpop.f32.mrb[0].mxu0
        %v908 = vpop.f32.mrb[0].mxu0
        %v909 = vadd.f32 0.0, %v908
        %v910 = vpop.f32.mrb[0].mxu0
        %911 = vmatprep.mubr.bf16.mxu0 %v644
        %912 = vmatmul.mubr.bf16.gmra.mrb[0].mxu0 %v643
        %v913 = vpop.f32.mrb[0].mxu0
        %v914 = vadd.f32 0.0, %v913
        %v915 = vpop.f32.mrb[0].mxu0
        %v916 = vpop.f32.mrb[0].mxu0
        %v917 = vadd.f32 0.0, %v916
        %v918 = vpop.f32.mrb[0].mxu0
        %919 = vmatprep.mubr.bf16.mxu0 %v646
        %920 = vmatmul.mubr.bf16.gmra.mrb[0].mxu0 %v645
        %v921 = vpop.f32.mrb[0].mxu0
        %v922 = vadd.f32 0.0, %v921
        %v923 = vpop.f32.mrb[0].mxu0
        %v924 = vpop.f32.mrb[0].mxu0
        %v925 = vadd.f32 0.0, %v924
        %v926 = vpop.f32.mrb[0].mxu0
        %927 = vmatprep.mubr.bf16.mxu0 %v648
        %928 = vmatmul.mubr.bf16.gmra.mrb[0].mxu0 %v647
        %v929 = vpop.f32.mrb[0].mxu0
        %v930 = vadd.f32 0.0, %v929
        %v931 = vpop.f32.mrb[0].mxu0
        %v932 = vpop.f32.mrb[0].mxu0
        %v933 = vadd.f32 0.0, %v932
        %v934 = vpop.f32.mrb[0].mxu0
        %935 = vmatprep.mubr.bf16.mxu0 %v650
        %936 = vmatmul.mubr.bf16.gmra.mrb[0].mxu0 %v649
        %v937 = vpop.f32.mrb[0].mxu0
        %v938 = vadd.f32 0.0, %v937
        %v939 = vpop.f32.mrb[0].mxu0
        %v940 = vpop.f32.mrb[0].mxu0
        %v941 = vadd.f32 0.0, %v940
        %v942 = vpop.f32.mrb[0].mxu0
        %943 = vmatprep.mubr.bf16.mxu0 %v652
        %944 = vmatmul.mubr.bf16.gmra.mrb[0].mxu0 %v651
        %v945 = vpop.f32.mrb[0].mxu0
        %v946 = vadd.f32 0.0, %v945
        %v947 = vpop.f32.mrb[0].mxu0
        %v948 = vpop.f32.mrb[0].mxu0
        %v949 = vadd.f32 0.0, %v948
        %v950 = vpop.f32.mrb[0].mxu0
        %951 = vmatprep.mubr.bf16.mxu0 %v654
        %952 = vmatmul.mubr.bf16.gmra.mrb[0].mxu0 %v653
        %v953 = vpop.f32.mrb[0].mxu0
        %v954 = vadd.f32 0.0, %v953
        %v955 = vpop.f32.mrb[0].mxu0
        %v956 = vpop.f32.mrb[0].mxu0
        %v957 = vadd.f32 0.0, %v956
        %v958 = vpop.f32.mrb[0].mxu0
        %959 = vmatprep.mubr.bf16.mxu0 %v656
        %960 = vmatmul.mubr.bf16.gmra.mrb[0].mxu0 %v655
        %v961 = vpop.f32.mrb[0].mxu0
        %v962 = vadd.f32 0.0, %v961
        %v963 = vpop.f32.mrb[0].mxu0
        %v964 = vpop.f32.mrb[0].mxu0
        %v965 = vadd.f32 0.0, %v964
        %v966 = vpop.f32.mrb[0].mxu0
        %967 = vmatprep.mubr.bf16.mxu0 %v658
        %968 = vmatmul.mubr.bf16.gmra.mrb[0].mxu0 %v657
        %v969 = vpop.f32.mrb[0].mxu0
        %v970 = vadd.f32 0.0, %v969
        %v971 = vpop.f32.mrb[0].mxu0
        %v972 = vpop.f32.mrb[0].mxu0
        %v973 = vadd.f32 0.0, %v972
        %v974 = vpop.f32.mrb[0].mxu0
        %975 = vmatprep.mubr.bf16.mxu0 %v660
        %976 = vmatmul.mubr.bf16.gmra.mrb[0].mxu0 %v659
        %v977 = vpop.f32.mrb[0].mxu0
        %v978 = vadd.f32 0.0, %v977
        %v979 = vpop.f32.mrb[0].mxu0
        %v980 = vpop.f32.mrb[0].mxu0
        %v981 = vadd.f32 0.0, %v980
        %v982 = vpop.f32.mrb[0].mxu0
        %983 = vmatprep.mubr.bf16.mxu0 %v662
        %984 = vmatmul.mubr.bf16.gmra.mrb[0].mxu0 %v661
        %v985 = vpop.f32.mrb[0].mxu0
        %v986 = vadd.f32 0.0, %v985
        %v987 = vpop.f32.mrb[0].mxu0
        %v988 = vpop.f32.mrb[0].mxu0
        %v989 = vadd.f32 0.0, %v988
        %v990 = vpop.f32.mrb[0].mxu0
        %991 = vmatprep.mubr.bf16.mxu0 %v664
        %992 = vmatmul.mubr.bf16.gmra.mrb[0].mxu0 %v663
        %v993 = vpop.f32.mrb[0].mxu0
        %v994 = vadd.f32 0.0, %v993
        %v995 = vpop.f32.mrb[0].mxu0
        %v996 = vpop.f32.mrb[0].mxu0
        %v997 = vadd.f32 0.0, %v996
        %v998 = vpop.f32.mrb[0].mxu0
        %999 = vmatprep.mubr.bf16.mxu0 %v666
        %1000 = vmatmul.mubr.bf16.gmra.mrb[0].mxu0 %v665
        %v1001 = vpop.f32.mrb[0].mxu0
        %v1002 = vadd.f32 0.0, %v1001
        %v1003 = vpop.f32.mrb[0].mxu0
        %v1004 = vpop.f32.mrb[0].mxu0
        %v1005 = vadd.f32 0.0, %v1004
        %v1006 = vpop.f32.mrb[0].mxu0
        %1007 = vmatprep.mubr.bf16.mxu0 %v668
        %1008 = vmatmul.mubr.bf16.gmra.mrb[0].mxu0 %v667
        %v1009 = vpop.f32.mrb[0].mxu0
        %v1010 = vadd.f32 0.0, %v1009
        %v1011 = vpop.f32.mrb[0].mxu0
        %v1012 = vpop.f32.mrb[0].mxu0
        %v1013 = vadd.f32 0.0, %v1012
        %v1014 = vpop.f32.mrb[0].mxu0
        %1015 = vmatprep.mubr.bf16.mxu0 %v670
        %1016 = vmatmul.mubr.bf16.gmra.mrb[0].mxu0 %v669
        %v1017 = vpop.f32.mrb[0].mxu0
        %v1018 = vadd.f32 0.0, %v1017
        %v1019 = vpop.f32.mrb[0].mxu0
        %v1020 = vpop.f32.mrb[0].mxu0
        %v1021 = vadd.f32 0.0, %v1020
        %v1022 = vpop.f32.mrb[0].mxu0
        %1023 = vmatprep.mubr.bf16.mxu0 %v672
        %1024 = vmatmul.mubr.bf16.gmra.mrb[0].mxu0 %v671
        %v1025 = vpop.f32.mrb[0].mxu0
        %v1026 = vadd.f32 0.0, %v1025
        %v1027 = vpop.f32.mrb[0].mxu0
        %v1028 = vpop.f32.mrb[0].mxu0
        %v1029 = vadd.f32 0.0, %v1028
        %v1030 = vpop.f32.mrb[0].mxu0
        %1031 = vmatprep.mubr.bf16.mxu0 %v674
        %1032 = vmatmul.mubr.bf16.gmra.mrb[0].mxu0 %v673
        %v1033 = vpop.f32.mrb[0].mxu0
        %v1034 = vadd.f32 0.0, %v1033
        %v1035 = vpop.f32.mrb[0].mxu0
        %v1036 = vpop.f32.mrb[0].mxu0
        %v1037 = vadd.f32 0.0, %v1036
        %v1038 = vpop.f32.mrb[0].mxu0
        %1039 = vmatprep.mubr.bf16.mxu0 %v676
        %1040 = vmatmul.mubr.bf16.gmra.mrb[0].mxu0 %v675
        %v1041 = vpop.f32.mrb[0].mxu0
        %v1042 = vadd.f32 0.0, %v1041
        %v1043 = vpop.f32.mrb[0].mxu0
        %v1044 = vpop.f32.mrb[0].mxu0
        %v1045 = vadd.f32 0.0, %v1044
        %v1046 = vpop.f32.mrb[0].mxu0
        %1047 = vmatprep.mubr.bf16.mxu0 %v678
        %1048 = vmatmul.mubr.bf16.gmra.mrb[0].mxu0 %v677
        %v1049 = vpop.f32.mrb[0].mxu0
        %v1050 = vadd.f32 0.0, %v1049
        %v1051 = vpop.f32.mrb[0].mxu0
        %v1052 = vpop.f32.mrb[0].mxu0
        %v1053 = vadd.f32 0.0, %v1052
        %v1054 = vpop.f32.mrb[0].mxu0
        %1055 = vmatprep.mubr.bf16.mxu0 %v680
        %1056 = vmatmul.mubr.bf16.gmra.mrb[0].mxu0 %v679
        %v1057 = vpop.f32.mrb[0].mxu0
        %v1058 = vadd.f32 0.0, %v1057
        %v1059 = vpop.f32.mrb[0].mxu0
        %v1060 = vpop.f32.mrb[0].mxu0
        %v1061 = vadd.f32 0.0, %v1060
        %v1062 = vpop.f32.mrb[0].mxu0
        %1063 = vmatprep.mubr.bf16.mxu0 %v682
        %1064 = vmatmul.mubr.bf16.gmra.mrb[0].mxu0 %v681
        %v1065 = vpop.f32.mrb[0].mxu0
        %v1066 = vadd.f32 0.0, %v1065
        %v1067 = vpop.f32.mrb[0].mxu0
        %v1068 = vpop.f32.mrb[0].mxu0
        %v1069 = vadd.f32 0.0, %v1068
        %v1070 = vpop.f32.mrb[0].mxu0
        %1071 = vmatprep.mubr.bf16.mxu0 %v684
        %1072 = vmatmul.mubr.bf16.gmra.mrb[0].mxu0 %v683
        %v1073 = vpop.f32.mrb[0].mxu0
        %v1074 = vadd.f32 0.0, %v1073
        %v1075 = vpop.f32.mrb[0].mxu0
        %v1076 = vpop.f32.mrb[0].mxu0
        %v1077 = vadd.f32 0.0, %v1076
        %v1078 = vpop.f32.mrb[0].mxu0
        %1079 = vmatprep.mubr.bf16.mxu0 %v686
        %1080 = vmatmul.mubr.bf16.gmra.mrb[0].mxu0 %v685
        %v1081 = vpop.f32.mrb[0].mxu0
        %v1082 = vadd.f32 0.0, %v1081
        %v1083 = vpop.f32.mrb[0].mxu0
        %v1084 = vpop.f32.mrb[0].mxu0
        %v1085 = vadd.f32 0.0, %v1084
        %v1086 = vpop.f32.mrb[0].mxu0
        %1087 = vmatprep.mubr.bf16.mxu0 %v688
        %1088 = vmatmul.mubr.bf16.gmra.mrb[0].mxu0 %v687
        %v1089 = vpop.f32.mrb[0].mxu0
        %v1090 = vadd.f32 0.0, %v1089
        %v1091 = vpop.f32.mrb[0].mxu0
        %v1092 = vpop.f32.mrb[0].mxu0
        %v1093 = vadd.f32 0.0, %v1092
        %v1094 = vpop.f32.mrb[0].mxu0
        %1095 = vmatprep.mubr.bf16.mxu0 %v690
        %1096 = vmatmul.mubr.bf16.gmra.mrb[0].mxu0 %v689
        %v1097 = vpop.f32.mrb[0].mxu0
        %v1098 = vadd.f32 0.0, %v1097
        %v1099 = vpop.f32.mrb[0].mxu0
        %v1100 = vpop.f32.mrb[0].mxu0
        %v1101 = vadd.f32 0.0, %v1100
        %v1102 = vpop.f32.mrb[0].mxu0
        %1103 = vmatprep.mubr.bf16.mxu0 %v692
        %1104 = vmatmul.mubr.bf16.gmra.mrb[0].mxu0 %v691
        %v1105 = vpop.f32.mrb[0].mxu0
        %v1106 = vadd.f32 0.0, %v1105
        %v1107 = vpop.f32.mrb[0].mxu0
        %v1108 = vpop.f32.mrb[0].mxu0
        %v1109 = vadd.f32 0.0, %v1108
        %v1110 = vpop.f32.mrb[0].mxu0
        %1111 = vmatprep.mubr.bf16.mxu0 %v694
        %1112 = vmatmul.mubr.bf16.gmra.mrb[0].mxu0 %v693
        %v1113 = vpop.f32.mrb[0].mxu0
        %v1114 = vadd.f32 0.0, %v1113
        %v1115 = vpop.f32.mrb[0].mxu0
        %v1116 = vpop.f32.mrb[0].mxu0
        %v1117 = vadd.f32 0.0, %v1116
        %v1118 = vpop.f32.mrb[0].mxu0
        %1119 = vmatprep.mubr.bf16.mxu0 %v696
        %1120 = vmatmul.mubr.bf16.gmra.mrb[0].mxu0 %v695
        %v1121 = vpop.f32.mrb[0].mxu0
        %v1122 = vadd.f32 0.0, %v1121
        %v1123 = vpop.f32.mrb[0].mxu0
        %v1124 = vpop.f32.mrb[0].mxu0
        %v1125 = vadd.f32 0.0, %v1124
        %v1126 = vpop.f32.mrb[0].mxu0
        %1127 = vmatprep.mubr.bf16.mxu0 %v698
        %1128 = vmatmul.mubr.bf16.gmra.mrb[0].mxu0 %v697
        %v1129 = vpop.f32.mrb[0].mxu0
        %v1130 = vadd.f32 0.0, %v1129
        %v1131 = vpop.f32.mrb[0].mxu0
        %v1132 = vpop.f32.mrb[0].mxu0
        %v1133 = vadd.f32 0.0, %v1132
        %v1134 = vpop.f32.mrb[0].mxu0
        %1135 = vmatprep.mubr.bf16.mxu0 %v700
        %1136 = vmatmul.mubr.bf16.gmra.mrb[0].mxu0 %v699
        %v1137 = vpop.f32.mrb[0].mxu0
        %v1138 = vadd.f32 0.0, %v1137
        %v1139 = vpop.f32.mrb[0].mxu0
        %v1140 = vpop.f32.mrb[0].mxu0
        %v1141 = vadd.f32 0.0, %v1140
        %v1142 = vpop.f32.mrb[0].mxu0
        %1143 = vmatprep.mubr.bf16.mxu0 %v702
        %1144 = vmatmul.mubr.bf16.gmra.mrb[0].mxu0 %v701
        %v1145 = vpop.f32.mrb[0].mxu0
        %v1146 = vadd.f32 0.0, %v1145
        %v1147 = vpop.f32.mrb[0].mxu0
        %v1148 = vpop.f32.mrb[0].mxu0
        %v1149 = vadd.f32 0.0, %v1148
        %v1150 = vpop.f32.mrb[0].mxu0
        %1151 = vdwg.mxu0
        %v1152 = vadd.f32 %v287, %v898
        %v1153 = vadd.f32 %v288, %v901
        %v1154 = vadd.f32 %v289, %v906
        %v1155 = vadd.f32 %v290, %v909
        %v1156 = vadd.f32 %v291, %v914
        %v1157 = vadd.f32 %v292, %v917
        %v1158 = vadd.f32 %v293, %v922
        %v1159 = vadd.f32 %v294, %v925
        %v1160 = vadd.f32 %v295, %v930
        %v1161 = vadd.f32 %v296, %v933
        %v1162 = vadd.f32 %v297, %v938
        %v1163 = vadd.f32 %v298, %v941
        %v1164 = vadd.f32 %v299, %v946
        %v1165 = vadd.f32 %v300, %v949
        %v1166 = vadd.f32 %v301, %v954
        %v1167 = vadd.f32 %v302, %v957
        %v1168 = vadd.f32 %v303, %v962
        %v1169 = vadd.f32 %v304, %v965
        %v1170 = vadd.f32 %v305, %v970
        %v1171 = vadd.f32 %v306, %v973
        %v1172 = vadd.f32 %v307, %v978
        %v1173 = vadd.f32 %v308, %v981
        %v1174 = vadd.f32 %v309, %v986
        %v1175 = vadd.f32 %v310, %v989
        %v1176 = vadd.f32 %v311, %v994
        %v1177 = vadd.f32 %v312, %v997
        %v1178 = vadd.f32 %v313, %v1002
        %v1179 = vadd.f32 %v314, %v1005
        %v1180 = vadd.f32 %v315, %v1010
        %v1181 = vadd.f32 %v316, %v1013
        %v1182 = vadd.f32 %v317, %v1018
        %v1183 = vadd.f32 %v318, %v1021
        %v1184 = vadd.f32 %v319, %v1026
        %v1185 = vadd.f32 %v320, %v1029
        %v1186 = vadd.f32 %v321, %v1034
        %v1187 = vadd.f32 %v322, %v1037
        %v1188 = vadd.f32 %v323, %v1042
        %v1189 = vadd.f32 %v324, %v1045
        %v1190 = vadd.f32 %v325, %v1050
        %v1191 = vadd.f32 %v326, %v1053
        %v1192 = vadd.f32 %v327, %v1058
        %v1193 = vadd.f32 %v328, %v1061
        %v1194 = vadd.f32 %v329, %v1066
        %v1195 = vadd.f32 %v330, %v1069
        %v1196 = vadd.f32 %v331, %v1074
        %v1197 = vadd.f32 %v332, %v1077
        %v1198 = vadd.f32 %v333, %v1082
        %v1199 = vadd.f32 %v334, %v1085
        %v1200 = vadd.f32 %v335, %v1090
        %v1201 = vadd.f32 %v336, %v1093
        %v1202 = vadd.f32 %v337, %v1098
        %v1203 = vadd.f32 %v338, %v1101
        %v1204 = vadd.f32 %v339, %v1106
        %v1205 = vadd.f32 %v340, %v1109
        %v1206 = vadd.f32 %v341, %v1114
        %v1207 = vadd.f32 %v342, %v1117
        %v1208 = vadd.f32 %v343, %v1122
        %v1209 = vadd.f32 %v344, %v1125
        %v1210 = vadd.f32 %v345, %v1130
        %v1211 = vadd.f32 %v346, %v1133
        %v1212 = vadd.f32 %v347, %v1138
        %v1213 = vadd.f32 %v348, %v1141
        %v1214 = vadd.f32 %v349, %v1146
        %v1215 = vadd.f32 %v350, %v1149
        %1216 = vst [vmem:[%s195] sm:$0xff] %v1152
        %1217 = vst [vmem:[%s195 + $0x8] sm:$0xff] %v1153
        %1218 = vst [vmem:[%s195 + $0x10] sm:$0xff] %v1154
        %1219 = vst [vmem:[%s195 + $0x18] sm:$0xff] %v1155
        %1220 = vst [vmem:[%s195 + $0x20] sm:$0xff] %v1156
        %1221 = vst [vmem:[%s195 + $0x28] sm:$0xff] %v1157
        %1222 = vst [vmem:[%s195 + $0x30] sm:$0xff] %v1158
        %1223 = vst [vmem:[%s195 + $0x38] sm:$0xff] %v1159
        %1224 = vst [vmem:[%s195 + $0x40] sm:$0xff] %v1160
        %1225 = vst [vmem:[%s195 + $0x48] sm:$0xff] %v1161
        %1226 = vst [vmem:[%s195 + $0x50] sm:$0xff] %v1162
        %1227 = vst [vmem:[%s195 + $0x58] sm:$0xff] %v1163
        %1228 = vst [vmem:[%s195 + $0x60] sm:$0xff] %v1164
        %1229 = vst [vmem:[%s195 + $0x68] sm:$0xff] %v1165
        %1230 = vst [vmem:[%s195 + $0x70] sm:$0xff] %v1166
        %1231 = vst [vmem:[%s195 + $0x78] sm:$0xff] %v1167
        %1232 = vst [vmem:[%s195 + $0x80] sm:$0xff] %v1168
        %1233 = vst [vmem:[%s195 + $0x88] sm:$0xff] %v1169
        %1234 = vst [vmem:[%s195 + $0x90] sm:$0xff] %v1170
        %1235 = vst [vmem:[%s195 + $0x98] sm:$0xff] %v1171
        %1236 = vst [vmem:[%s195 + $0xa0] sm:$0xff] %v1172
        %1237 = vst [vmem:[%s195 + $0xa8] sm:$0xff] %v1173
        %1238 = vst [vmem:[%s195 + $0xb0] sm:$0xff] %v1174
        %1239 = vst [vmem:[%s195 + $0xb8] sm:$0xff] %v1175
        %1240 = vst [vmem:[%s195 + $0xc0] sm:$0xff] %v1176
        %1241 = vst [vmem:[%s195 + $0xc8] sm:$0xff] %v1177
        %1242 = vst [vmem:[%s195 + $0xd0] sm:$0xff] %v1178
        %1243 = vst [vmem:[%s195 + $0xd8] sm:$0xff] %v1179
        %1244 = vst [vmem:[%s195 + $0xe0] sm:$0xff] %v1180
        %1245 = vst [vmem:[%s195 + $0xe8] sm:$0xff] %v1181
        %1246 = vst [vmem:[%s195 + $0xf0] sm:$0xff] %v1182
        %1247 = vst [vmem:[%s195 + $0xf8] sm:$0xff] %v1183
        %1248 = vst [vmem:[%s195 + $0x100] sm:$0xff] %v1184
        %1249 = vst [vmem:[%s195 + $0x108] sm:$0xff] %v1185
        %1250 = vst [vmem:[%s195 + $0x110] sm:$0xff] %v1186
        %1251 = vst [vmem:[%s195 + $0x118] sm:$0xff] %v1187
        %1252 = vst [vmem:[%s195 + $0x120] sm:$0xff] %v1188
        %1253 = vst [vmem:[%s195 + $0x128] sm:$0xff] %v1189
        %1254 = vst [vmem:[%s195 + $0x130] sm:$0xff] %v1190
        %1255 = vst [vmem:[%s195 + $0x138] sm:$0xff] %v1191
        %1256 = vst [vmem:[%s195 + $0x140] sm:$0xff] %v1192
        %1257 = vst [vmem:[%s195 + $0x148] sm:$0xff] %v1193
        %1258 = vst [vmem:[%s195 + $0x150] sm:$0xff] %v1194
        %1259 = vst [vmem:[%s195 + $0x158] sm:$0xff] %v1195
        %1260 = vst [vmem:[%s195 + $0x160] sm:$0xff] %v1196
        %1261 = vst [vmem:[%s195 + $0x168] sm:$0xff] %v1197
        %1262 = vst [vmem:[%s195 + $0x170] sm:$0xff] %v1198
        %1263 = vst [vmem:[%s195 + $0x178] sm:$0xff] %v1199
        %1264 = vst [vmem:[%s195 + $0x180] sm:$0xff] %v1200
        %1265 = vst [vmem:[%s195 + $0x188] sm:$0xff] %v1201
        %1266 = vst [vmem:[%s195 + $0x190] sm:$0xff] %v1202
        %1267 = vst [vmem:[%s195 + $0x198] sm:$0xff] %v1203
        %1268 = vst [vmem:[%s195 + $0x1a0] sm:$0xff] %v1204
        %1269 = vst [vmem:[%s195 + $0x1a8] sm:$0xff] %v1205
        %1270 = vst [vmem:[%s195 + $0x1b0] sm:$0xff] %v1206
        %1271 = vst [vmem:[%s195 + $0x1b8] sm:$0xff] %v1207
        %1272 = vst [vmem:[%s195 + $0x1c0] sm:$0xff] %v1208
        %1273 = vst [vmem:[%s195 + $0x1c8] sm:$0xff] %v1209
        %1274 = vst [vmem:[%s195 + $0x1d0] sm:$0xff] %v1210
        %1275 = vst [vmem:[%s195 + $0x1d8] sm:$0xff] %v1211
        %1276 = vst [vmem:[%s195 + $0x1e0] sm:$0xff] %v1212
        %1277 = vst [vmem:[%s195 + $0x1e8] sm:$0xff] %v1213
        %1278 = vst [vmem:[%s195 + $0x1f0] sm:$0xff] %v1214
        %1279 = vst [vmem:[%s195 + $0x1f8] sm:$0xff] %v1215
        %s1280 = sand.u32 %s101, 1
        %s1281 = scalar_lea.sflag [#allocation3], %s1280
        %s1282 = sand.u32 %s101, 1
        %s1283 = smul.addr %s1282, 512
        %s1284 = scalar_lea.vmem [#allocation2], %s1283
        // Predicated region
        $region33: #{conv7x7_s2_p3.1} parent=27 // pred_check
          %p1285 = pneg %p111
        $region34: #{conv7x7_s2_p3.1} parent=27 // pred_check_branch
          %1287 = sbr.rel (%p1285) target = $region36
        $region35: #{conv7x7_s2_p3.1} parent=27 // pred_region
          %s1288 = smul.u32 64, %s21
          %s1290 = ssub.s32 8192, 8192
          %1291 = vsyncadd %s1281, %s1290
          %s1292 = sadd.s32 %s22, %s1288
          %s1293 = smul.addr %s1292, 128
          %s1294 = scalar_lea.hbm %s2, %s1293
          %s1295 = sshll.u32 %s1284, 4
          %s1296 = int_to_ptr.vmem [resolvable:$true] %s1295
          %1301 = dma.vmem_to_hbm [thread:$0]  %s1296, 8192, %s1294, %s1281, 128, 128, 8
        $region36: #{conv7x7_s2_p3.1} parent=27 // pred_fallthru
          _
      $region28: #{conv7x7_s2_p3.1} parent=5 // pred_fallthru
        _
      %p1302 = scmp.le.s32.totalorder 2, %s11
      // Predicated region
      $region37: #{conv7x7_s2_p3.1} parent=5 // pred_check
        %p1303 = pneg %p1302
      $region38: #{conv7x7_s2_p3.1} parent=5 // pred_check_branch
        %1305 = sbr.rel (%p1303) target = $region40
      $region39: #{conv7x7_s2_p3.1} parent=5 // pred_region
        %s1306 = ssub.s32 %s11, 2
        // Predicated region
        $region41: #{conv7x7_s2_p3.1} parent=39 // pred_check
          %p1307 = pneg %p117
        $region42: #{conv7x7_s2_p3.1} parent=39 // pred_check_branch
          %1309 = sbr.rel (%p1307) target = $region44
        $region43: #{conv7x7_s2_p3.1} parent=39 // pred_region
          %s1310 = sand.u32 %s102, 1
          %s1311 = scalar_lea.sflag [#allocation3], %s1310
          %s1312 = sand.u32 %s102, 1
          %s1313 = smul.addr %s1312, 512
          %s1314 = scalar_lea.vmem [#allocation2], %s1313
          %1315 = dma.done %s1311, 8192
        $region44: #{conv7x7_s2_p3.1} parent=39 // pred_fallthru
          _
      $region40: #{conv7x7_s2_p3.1} parent=5 // pred_fallthru
        _
    $region6: #{conv7x7_s2_p3.1} parent=1 // loop_footer
      %s15 = sadd.s32 1, %s11
    $region7: #{conv7x7_s2_p3.1} parent=1 // loop_footer_branch
      %10 = sbr.rel target = $region3
    $region8: #{conv7x7_s2_p3.1} parent=1 // loop_exit
      _
    %1316 = vsyncpa [#allocation3], 1
    %s1317 = scalar_lea.sflag [#allocation3], 1
    %1318 = vsyncpa %s1317, 1

</llo_original>
